<compile_context>
chip_gen: v6e
topology: v6e:2x2x1
jax: 0.10.0
libtpu: 0.0.40
codegen_flags: <defaults>
</compile_context>

<pallas_src>
import functools
import math

import jax
import jax.numpy as jnp
from jax import lax
from jax.experimental import pallas as pl
from jax.experimental.pallas import tpu as pltpu


def _sdpa_kernel(q_in_ref, k_in_ref, wq_ref, bq_ref, wk_ref, bk_ref, out_ref,
                 kbuf_ref, *, head, d_q, d_kv):
    # Block shapes per grid point (b, i):
    #   q_in_ref : (1, block_nq, d_model)   bf16
    #   k_in_ref : (1, nk, d_model)         bf16
    #   wq_ref   : (d_model, head*d_q)      bf16  (1/sqrt(d_kv) pre-folded)
    #   bq_ref   : (1, head*d_q)            f32   (1/sqrt(d_kv) pre-folded)
    #   wk_ref   : (d_model, head*d_kv)     bf16
    #   bk_ref   : (1, head*d_kv)           f32
    #   out_ref  : (1, head, block_nq, nk)  f32
    #   kbuf_ref : (nk, head*d_kv)          bf16  VMEM scratch (per-batch K cache)
    i = pl.program_id(1)

    # K projection: once per batch element, cached in VMEM for all nq tiles.
    @pl.when(i == 0)
    def _():
        keys = k_in_ref[0]                                   # (nk, d_model)
        k = jnp.dot(keys, wk_ref[...],
                    preferred_element_type=jnp.float32) + bk_ref[...]
        kbuf_ref[...] = k.astype(jnp.bfloat16)

    # Head-fused Q projection for this nq tile (f32 accumulation, f32 bias add).
    queries = q_in_ref[0]                                    # (block_nq, d_model)
    q = jnp.dot(queries, wq_ref[...],
                preferred_element_type=jnp.float32) + bq_ref[...]
    qb = q.astype(jnp.bfloat16)                              # bf16 MXU inputs
    kb = kbuf_ref[...]                                       # (nk, head*d_kv) bf16

    for h in range(head):                                    # static unroll; head is small
        qh = qb[:, h * d_q:(h + 1) * d_q]                    # (block_nq, d_q)
        kh = kb[:, h * d_kv:(h + 1) * d_kv]                  # (nk, d_kv)
        # q @ k^T expressed directly as a contraction (no materialized k.T).
        s = lax.dot_general(
            qh, kh,
            dimension_numbers=(((1,), (1,)), ((), ())),
            preferred_element_type=jnp.float32)              # (block_nq, nk)
        # Numerically stable softmax over nk, all in f32.
        s = s - jnp.max(s, axis=-1, keepdims=True)
        e = jnp.exp(s)
        inv = pl.reciprocal(jnp.sum(e, axis=-1, keepdims=True), approx=True)
        out_ref[0, h] = e * inv


def scaled_dot_product_attention(queries, keys, wq, bq, wk, bk,
                                 *, head, d_q, d_kv, block_nq=256):
    """queries/keys: (B, n, d_model) f32.
    wq: (head*d_q, d_model), bq: (head*d_q,)  -- torch nn.Linear layout.
    wk: (head*d_kv, d_model), bk: (head*d_kv,).
    Returns att = softmax(q_h k_h^T / sqrt(d_kv)) of shape (B, head, nq, nk), f32.
    """
    B, nq, d_model = queries.shape
    nk = keys.shape[1]
    assert d_q == d_kv, "torch.matmul(q, k) requires d_q == d_kv"

    block_nq = min(block_nq, nq)
    assert nq % block_nq == 0 and block_nq % 8 == 0, "nq tile must divide nq, mult of 8"

    scale = 1.0 / math.sqrt(float(d_kv))
    # Pre-transposed, head-fused, scale-folded parameters (host-side, free).
    wq_t = (wq.T * scale).astype(jnp.bfloat16)          # (d_model, head*d_q)
    bq_r = (bq * scale).reshape(1, head * d_q).astype(jnp.float32)
    wk_t = wk.T.astype(jnp.bfloat16)                    # (d_model, head*d_kv)
    bk_r = bk.reshape(1, head * d_kv).astype(jnp.float32)
    q_bf = queries.astype(jnp.bfloat16)
    k_bf = keys.astype(jnp.bfloat16)

    kernel = functools.partial(_sdpa_kernel, head=head, d_q=d_q, d_kv=d_kv)
    grid = (B, nq // block_nq)

    return pl.pallas_call(
        kernel,
        out_shape=jax.ShapeDtypeStruct((B, head, nq, nk), jnp.float32),
        grid_spec=pltpu.PrefetchScalarGridSpec(
            num_scalar_prefetch=0,
            grid=grid,
            in_specs=[
                pl.BlockSpec((1, block_nq, d_model), lambda b, i: (b, i, 0)),
                pl.BlockSpec((1, nk, d_model), lambda b, i: (b, 0, 0)),
                # Weights/biases: constant block index -> VMEM-resident across grid.
                pl.BlockSpec((d_model, head * d_q), lambda b, i: (0, 0)),
                pl.BlockSpec((1, head * d_q), lambda b, i: (0, 0)),
                pl.BlockSpec((d_model, head * d_kv), lambda b, i: (0, 0)),
                pl.BlockSpec((1, head * d_kv), lambda b, i: (0, 0)),
            ],
            out_specs=pl.BlockSpec((1, head, block_nq, nk), lambda b, i: (b, 0, i, 0)),
            scratch_shapes=[pltpu.VMEM((nk, head * d_kv), jnp.bfloat16)],
        ),
        compiler_params=pltpu.CompilerParams(
            # nq axis must be "arbitrary": the per-batch K cache relies on
            # sequential iteration of nq tiles within each batch element.
            dimension_semantics=("parallel", "arbitrary"),
            vmem_limit_bytes=64 * 1024 * 1024,
        ),
    )(q_bf, k_bf, wq_t, bq_r, wk_t, bk_r)


def _xavier_uniform(key, fan_out, fan_in, dtype=jnp.float32):
    # matches nn.init.xavier_uniform_ on a (fan_out, fan_in) weight
    a = math.sqrt(6.0 / (fan_in + fan_out))
    return jax.random.uniform(key, (fan_out, fan_in), dtype=dtype, minval=-a, maxval=a)


def _reference(queries, keys, wq, bq_flat, wk, bk_flat, head, d_q, d_kv):
    # plain-JAX f32 reference mirroring the PyTorch forward exactly
    B, nq, _ = queries.shape
    nk = keys.shape[1]
    q = queries @ wq.T + bq_flat                               # (B, nq, H*d_q)
    k = keys @ wk.T + bk_flat                                  # (B, nk, H*d_kv)
    q = q.reshape(B, nq, head, d_q).transpose(0, 2, 1, 3)      # (B, H, nq, d_q)
    k = k.reshape(B, nk, head, d_kv).transpose(0, 2, 3, 1)     # (B, H, d_kv, nk)
    att = jnp.matmul(q, k) / math.sqrt(d_kv)
    return jax.nn.softmax(att, axis=-1)


if __name__ == "__main__":
    # Small, module-consistent shapes; seq=128 keeps the output store lane-dense.
    B, nq, nk = 2, 128, 128
    d_model, head, d_q, d_kv = 32, 2, 16, 16

    root = jax.random.PRNGKey(0)
    k_q, k_k, k_wq, k_wk = jax.random.split(root, 4)

    queries = jax.random.normal(k_q, (B, nq, d_model), dtype=jnp.float32)
    keys = jax.random.normal(k_k, (B, nk, d_model), dtype=jnp.float32)
    values = keys  # TODO(synk): fc_v / values do not affect the module's returned output

    # deterministic parameter init (xavier_uniform weights, zero biases)
    wq = _xavier_uniform(k_wq, head * d_q, d_model)    # (H*d_q, d_model), torch layout
    wk = _xavier_uniform(k_wk, head * d_kv, d_model)   # (H*d_kv, d_model)
    bq = jnp.zeros((head * d_q,), jnp.float32)
    bk = jnp.zeros((head * d_kv,), jnp.float32)
    # fc_v params exist in the module but do not affect the output (att only)

    att = scaled_dot_product_attention(
        queries, keys, wq, bq, wk, bk, head=head, d_q=d_q, d_kv=d_kv
    )
    att = jax.block_until_ready(att)

    ref = _reference(queries, keys, wq, bq, wk, bk, head, d_q, d_kv)
    assert att.shape == (B, head, nq, nk)
    # bf16 MXU inputs + approx reciprocal vs. exact-f32 reference: probabilities
    # shift by O(1e-3); 1e-2 abs tolerance cleanly separates correct vs. broken
    # (wrong head slicing / missing scale would be off by >5e-2).
    assert float(jnp.max(jnp.abs(att - ref))) < 1e-2
    assert float(jnp.max(jnp.abs(jnp.sum(att, axis=-1) - 1.0))) < 1e-2

    print("KERNEL_OK")
</pallas_src>

<mosaic_0001>
module attributes {stable_mosaic.version = 11 : i64} {
  func.func @_sdpa_kernel(%arg0: i32, %arg1: i32, %arg2: memref<1x128x32xbf16, #tpu.memory_space<vmem>>, %arg3: memref<1x128x32xbf16, #tpu.memory_space<vmem>>, %arg4: memref<32x32xbf16, #tpu.memory_space<vmem>>, %arg5: memref<1x32xf32, #tpu.memory_space<vmem>>, %arg6: memref<32x32xbf16, #tpu.memory_space<vmem>>, %arg7: memref<1x32xf32, #tpu.memory_space<vmem>>, %arg8: memref<1x2x128x128xf32, #tpu.memory_space<vmem>>, %arg9: memref<128x32xbf16, #tpu.memory_space<vmem>>) attributes {dimension_semantics = [#tpu.dimension_semantics<parallel>, #tpu.dimension_semantics<arbitrary>], iteration_bounds = array<i64: 2, 1>, scalar_prefetch = 0 : i64, scratch_operands = 1 : i64, tpu.core_type = #tpu.core_type<tc>, window_params = [{transform_indices = @transform_0, window_bounds = array<i64: 1, 128, 32>}, {transform_indices = @transform_1, window_bounds = array<i64: 1, 128, 32>}, {pipeline_mode = #tpu.pipeline_mode<synchronous>, transform_indices = @transform_2, window_bounds = array<i64: 32, 32>}, {pipeline_mode = #tpu.pipeline_mode<synchronous>, transform_indices = @transform_3, window_bounds = array<i64: 1, 32>}, {pipeline_mode = #tpu.pipeline_mode<synchronous>, transform_indices = @transform_4, window_bounds = array<i64: 32, 32>}, {pipeline_mode = #tpu.pipeline_mode<synchronous>, transform_indices = @transform_5, window_bounds = array<i64: 1, 32>}, {transform_indices = @transform_6, window_bounds = array<i64: 1, 2, 128, 128>}]} {
    %c0_i32 = arith.constant 0 : i32
    %0 = arith.cmpi eq, %arg1, %c0_i32 : i32
    %1 = arith.extui %0 : i1 to i32
    %c0_i32_0 = arith.constant 0 : i32
    %2 = arith.cmpi ne, %1, %c0_i32_0 : i32
    scf.if %2 {
      %c0_22 = arith.constant 0 : index
      %c0_23 = arith.constant 0 : index
      %c0_24 = arith.constant 0 : index
      %44 = vector.load %arg3[%c0_22, %c0_23, %c0_24] : memref<1x128x32xbf16, #tpu.memory_space<vmem>>, vector<1x128x32xbf16>
      %45 = vector.shape_cast %44 : vector<1x128x32xbf16> to vector<128x32xbf16>
      %c0_25 = arith.constant 0 : index
      %c0_26 = arith.constant 0 : index
      %46 = vector.load %arg6[%c0_25, %c0_26] : memref<32x32xbf16, #tpu.memory_space<vmem>>, vector<32x32xbf16>
      %cst_27 = arith.constant dense<0.000000e+00> : vector<128x32xf32>
      %47 = tpu.matmul %45, %46, %cst_27 {dimension_numbers = #tpu.dot_dimension_numbers<[1], [0], [0], [1], [0, 0, 1, 1], [], []>} : vector<128x32xbf16>, vector<32x32xbf16>, vector<128x32xf32> -> vector<128x32xf32>
      %c0_28 = arith.constant 0 : index
      %c0_29 = arith.constant 0 : index
      %48 = vector.load %arg7[%c0_28, %c0_29] : memref<1x32xf32, #tpu.memory_space<vmem>>, vector<1x32xf32>
      %49 = vector.broadcast %48 : vector<1x32xf32> to vector<128x32xf32>
      %50 = arith.addf %47, %49 : vector<128x32xf32>
      %51 = arith.truncf %50 : vector<128x32xf32> to vector<128x32xbf16>
      %c0_30 = arith.constant 0 : index
      %c0_31 = arith.constant 0 : index
      %52 = vector.load %arg9[%c0_30, %c0_31] : memref<128x32xbf16, #tpu.memory_space<vmem>>, vector<128x32xbf16>
      tpu.vector_store %arg9[%c0_30, %c0_31], %51 {strides = array<i32>} : memref<128x32xbf16, #tpu.memory_space<vmem>>, vector<128x32xbf16>,
    } else {
    }
    %c0 = arith.constant 0 : index
    %c0_1 = arith.constant 0 : index
    %c0_2 = arith.constant 0 : index
    %3 = vector.load %arg2[%c0, %c0_1, %c0_2] : memref<1x128x32xbf16, #tpu.memory_space<vmem>>, vector<1x128x32xbf16>
    %4 = vector.shape_cast %3 : vector<1x128x32xbf16> to vector<128x32xbf16>
    %c0_3 = arith.constant 0 : index
    %c0_4 = arith.constant 0 : index
    %5 = vector.load %arg4[%c0_3, %c0_4] : memref<32x32xbf16, #tpu.memory_space<vmem>>, vector<32x32xbf16>
    %cst = arith.constant dense<0.000000e+00> : vector<128x32xf32>
    %6 = tpu.matmul %4, %5, %cst {dimension_numbers = #tpu.dot_dimension_numbers<[1], [0], [0], [1], [0, 0, 1, 1], [], []>} : vector<128x32xbf16>, vector<32x32xbf16>, vector<128x32xf32> -> vector<128x32xf32>
    %c0_5 = arith.constant 0 : index
    %c0_6 = arith.constant 0 : index
    %7 = vector.load %arg5[%c0_5, %c0_6] : memref<1x32xf32, #tpu.memory_space<vmem>>, vector<1x32xf32>
    %8 = vector.broadcast %7 : vector<1x32xf32> to vector<128x32xf32>
    %9 = arith.addf %6, %8 : vector<128x32xf32>
    %10 = arith.truncf %9 : vector<128x32xf32> to vector<128x32xbf16>
    %c0_7 = arith.constant 0 : index
    %c0_8 = arith.constant 0 : index
    %11 = vector.load %arg9[%c0_7, %c0_8] : memref<128x32xbf16, #tpu.memory_space<vmem>>, vector<128x32xbf16>
    %12 = vector.extract_strided_slice %10 {offsets = [0, 0], sizes = [128, 16], strides = [1, 1]} : vector<128x32xbf16> to vector<128x16xbf16>
    %13 = vector.extract_strided_slice %11 {offsets = [0, 0], sizes = [128, 16], strides = [1, 1]} : vector<128x32xbf16> to vector<128x16xbf16>
    %cst_9 = arith.constant dense<0.000000e+00> : vector<128x128xf32>
    %14 = tpu.matmul %12, %13, %cst_9 {dimension_numbers = #tpu.dot_dimension_numbers<[1], [1], [0], [0], [0, 0, 1, 0], [], []>} : vector<128x16xbf16>, vector<128x16xbf16>, vector<128x128xf32> -> vector<128x128xf32>
    %cst_10 = arith.constant dense<0xFF800000> : vector<128xf32>
    %15 = vector.multi_reduction <maximumf>, %14, %cst_10 [1] : vector<128x128xf32> to vector<128xf32>
    %16 = vector.shape_cast %15 : vector<128xf32> to vector<128x1xf32>
    %17 = vector.broadcast %16 : vector<128x1xf32> to vector<128x128xf32>
    %18 = arith.subf %14, %17 : vector<128x128xf32>
    %19 = math.exp %18 : vector<128x128xf32>
    %cst_11 = arith.constant dense<0.000000e+00> : vector<128xf32>
    %20 = vector.multi_reduction <add>, %19, %cst_11 [1] : vector<128x128xf32> to vector<128xf32>
    %21 = vector.shape_cast %20 : vector<128xf32> to vector<128x1xf32>
    %22 = tpu.reciprocal %21 {approx = true} : vector<128x1xf32> -> vector<128x1xf32>
    %23 = vector.broadcast %22 : vector<128x1xf32> to vector<128x128xf32>
    %24 = arith.mulf %19, %23 : vector<128x128xf32>
    %c0_12 = arith.constant 0 : index
    %c0_13 = arith.constant 0 : index
    %c0_14 = arith.constant 0 : index
    %c0_15 = arith.constant 0 : index
    %25 = vector.load %arg8[%c0_12, %c0_13, %c0_14, %c0_15] : memref<1x2x128x128xf32, #tpu.memory_space<vmem>>, vector<1x1x128x128xf32>
    %26 = vector.shape_cast %25 : vector<1x1x128x128xf32> to vector<128x128xf32>
    %27 = vector.shape_cast %24 : vector<128x128xf32> to vector<1x1x128x128xf32>
    tpu.vector_store %arg8[%c0_12, %c0_13, %c0_14, %c0_15], %27 {strides = array<i32>} : memref<1x2x128x128xf32, #tpu.memory_space<vmem>>, vector<1x1x128x128xf32>,
    %28 = vector.extract_strided_slice %10 {offsets = [0, 16], sizes = [128, 16], strides = [1, 1]} : vector<128x32xbf16> to vector<128x16xbf16>
    %29 = vector.extract_strided_slice %11 {offsets = [0, 16], sizes = [128, 16], strides = [1, 1]} : vector<128x32xbf16> to vector<128x16xbf16>
    %cst_16 = arith.constant dense<0.000000e+00> : vector<128x128xf32>
    %30 = tpu.matmul %28, %29, %cst_16 {dimension_numbers = #tpu.dot_dimension_numbers<[1], [1], [0], [0], [0, 0, 1, 0], [], []>} : vector<128x16xbf16>, vector<128x16xbf16>, vector<128x128xf32> -> vector<128x128xf32>
    %cst_17 = arith.constant dense<0xFF800000> : vector<128xf32>
    %31 = vector.multi_reduction <maximumf>, %30, %cst_17 [1] : vector<128x128xf32> to vector<128xf32>
    %32 = vector.shape_cast %31 : vector<128xf32> to vector<128x1xf32>
    %33 = vector.broadcast %32 : vector<128x1xf32> to vector<128x128xf32>
    %34 = arith.subf %30, %33 : vector<128x128xf32>
    %35 = math.exp %34 : vector<128x128xf32>
    %cst_18 = arith.constant dense<0.000000e+00> : vector<128xf32>
    %36 = vector.multi_reduction <add>, %35, %cst_18 [1] : vector<128x128xf32> to vector<128xf32>
    %37 = vector.shape_cast %36 : vector<128xf32> to vector<128x1xf32>
    %38 = tpu.reciprocal %37 {approx = true} : vector<128x1xf32> -> vector<128x1xf32>
    %39 = vector.broadcast %38 : vector<128x1xf32> to vector<128x128xf32>
    %40 = arith.mulf %35, %39 : vector<128x128xf32>
    %c0_19 = arith.constant 0 : index
    %c1 = arith.constant 1 : index
    %c0_20 = arith.constant 0 : index
    %c0_21 = arith.constant 0 : index
    %41 = vector.load %arg8[%c0_19, %c1, %c0_20, %c0_21] : memref<1x2x128x128xf32, #tpu.memory_space<vmem>>, vector<1x1x128x128xf32>
    %42 = vector.shape_cast %41 : vector<1x1x128x128xf32> to vector<128x128xf32>
    %43 = vector.shape_cast %40 : vector<128x128xf32> to vector<1x1x128x128xf32>
    tpu.vector_store %arg8[%c0_19, %c1, %c0_20, %c0_21], %43 {strides = array<i32>} : memref<1x2x128x128xf32, #tpu.memory_space<vmem>>, vector<1x1x128x128xf32>,
    return
  }
  func.func @transform_0(%arg0: i32, %arg1: i32) -> (i32, i32, i32) {
    %c0_i32 = arith.constant 0 : i32
    %c0_i32_0 = arith.constant 0 : i32
    return %arg0, %arg1, %c0_i32 : i32, i32, i32
  }
  func.func @transform_1(%arg0: i32, %arg1: i32) -> (i32, i32, i32) {
    %c0_i32 = arith.constant 0 : i32
    %c0_i32_0 = arith.constant 0 : i32
    %c0_i32_1 = arith.constant 0 : i32
    return %arg0, %c0_i32, %c0_i32_0 : i32, i32, i32
  }
  func.func @transform_2(%arg0: i32, %arg1: i32) -> (i32, i32) {
    %c0_i32 = arith.constant 0 : i32
    %c0_i32_0 = arith.constant 0 : i32
    %c0_i32_1 = arith.constant 0 : i32
    return %c0_i32, %c0_i32_0 : i32, i32
  }
  func.func @transform_3(%arg0: i32, %arg1: i32) -> (i32, i32) {
    %c0_i32 = arith.constant 0 : i32
    %c0_i32_0 = arith.constant 0 : i32
    %c0_i32_1 = arith.constant 0 : i32
    return %c0_i32, %c0_i32_0 : i32, i32
  }
  func.func @transform_4(%arg0: i32, %arg1: i32) -> (i32, i32) {
    %c0_i32 = arith.constant 0 : i32
    %c0_i32_0 = arith.constant 0 : i32
    %c0_i32_1 = arith.constant 0 : i32
    return %c0_i32, %c0_i32_0 : i32, i32
  }
  func.func @transform_5(%arg0: i32, %arg1: i32) -> (i32, i32) {
    %c0_i32 = arith.constant 0 : i32
    %c0_i32_0 = arith.constant 0 : i32
    %c0_i32_1 = arith.constant 0 : i32
    return %c0_i32, %c0_i32_0 : i32, i32
  }
  func.func @transform_6(%arg0: i32, %arg1: i32) -> (i32, i32, i32, i32) {
    %c0_i32 = arith.constant 0 : i32
    %c0_i32_0 = arith.constant 0 : i32
    %c0_i32_1 = arith.constant 0 : i32
    return %arg0, %c0_i32, %arg1, %c0_i32_0 : i32, i32, i32, i32
  }
}

</mosaic_0001>

<llo_original>
// kernel: tpu_custom_call.1
$region0: #{tpu_custom_call.1}
  #allocation0 [shape = 'u32[]', space=smem, size = 0x4, offset = 0x4, fixed_abs, tag = 'smem constant byte address 0x4 - core index']
  #allocation1 [shape = 'u32[144,128]{1,0:T(1,128)}', space=vmem, size = 0x12000, scoped, tag = 'internal scratch']
  #allocation2 [shape = 'bf16[128,32]{1,0:T(8,128)(2,1)}', space=vmem, size = 0x8000, scoped, tag = 'scratch operand']
  %s0 = inlined_call_operand.vmem [shape: bf16[2,128,32], index: 0, kind: input, shape index: {}]
  %s1 = inlined_call_operand.vmem [shape: bf16[2,128,32], index: 1, kind: input, shape index: {}]
  %s2 = inlined_call_operand.vmem [shape: bf16[32,32], index: 2, kind: input, shape index: {}]
  %s3 = inlined_call_operand.vmem [shape: f32[1,32], index: 3, kind: input, shape index: {}]
  %s4 = inlined_call_operand.vmem [shape: bf16[32,32], index: 4, kind: input, shape index: {}]
  %s5 = inlined_call_operand.vmem [shape: f32[1,32], index: 5, kind: input, shape index: {}]
  %s6 = inlined_call_operand.hbm [shape: f32[2,2,128,128], index: 6, kind: output, shape index: {}]
  %s7 = sld [smem:[#allocation0]]
  $region61: #{tpu_custom_call.1} parent=0
    _
  %s9 = ssub.s32 1, %s7
  %s10 = scalar_select 0, %s9, %s7
  $region1: #{tpu_custom_call.1} parent=0
    #allocation3 [shape = 'u8[262144]{0}', space=vmem, size = 0x40000, scoped, tag = 'output window, operand 0']
    #allocation4 [shape = 's32[2]{0}', space=sflag, size = 0x8, scoped, tag = 'scoped memory for tpu_custom_call.1']
    %11 = vsyncpa [#allocation4], 0
    %s12 = scalar_lea.sflag [#allocation4], 1
    %13 = vsyncpa %s12, 0
    loop: start=0, step=1, limit=4
    $region2: #{tpu_custom_call.1} parent=1 // loop_pre_header
      _
    $region3: #{tpu_custom_call.1} parent=1 // loop_header
      %s15 = sphi 0, %s19
      %p16 = scmp.ge.s32.totalorder %s15, 4
      %s22 = sphi 0, %s34
      %s23 = sphi 0, %s30
      %s24 = sphi 0, %s22
      %s25 = sphi 0, %s23
      %s26 = sphi 0, %s24
      %s27 = sphi 0, %s25
      %s39 = sphi 0, %s41
      %s42 = sphi 0, %s39
      %s43 = sphi 0, %s42
      %s59 = sphi 0, %s43
      %s65 = sphi 0, %s67
      %s68 = sphi 0, %s65
      %s69 = sphi 0, %s68
      %s85 = sphi 0, %s69
      %s89 = sphi 0, %s89
      %s91 = sphi 0, %s89
      %s92 = sphi 0, %s91
      %s106 = sphi 0, %s92
      %s110 = sphi 0, %s110
      %s112 = sphi 0, %s110
      %s113 = sphi 0, %s112
      %s127 = sphi 0, %s113
      %s131 = sphi 0, %s131
      %s133 = sphi 0, %s131
      %s134 = sphi 0, %s133
      %s148 = sphi 0, %s134
      %s152 = sphi 0, %s152
      %s154 = sphi 0, %s152
      %s155 = sphi 0, %s154
      %s169 = sphi 0, %s155
      %s177 = sphi 0, %s179
      %s180 = sphi 0, %s177
      %s181 = sphi 0, %s180
      %s197 = sphi 0, %s181
    $region4: #{tpu_custom_call.1} parent=1 // loop_header_branch
      %18 = sbr.rel (%p16) target = $region8
    $region5: #{tpu_custom_call.1} parent=1 // loop_body
      %s20 = ssub.s32 %s15, 1
      %s21 = ssub.s32 %s15, 2
      %s28 = sadd.s32 1, %s23
      %p29 = scmp.ge.s32.totalorder %s28, 1
      %s30 = scalar_select %p29, 0, %s28
      %s31 = sadd.s32 1, %s22
      %s32 = scalar_select %p29, %s31, %s22
      %p33 = scmp.ge.s32.totalorder %s32, 2
      %s34 = scalar_select %p33, 0, %s32
      %s35 = ssub.s32 %s22, %s34
      %s36 = ssub.s32 %s23, %s30
      %s37 = sor.u32 %s35, %s36
      %p38 = scmp.eq.s32.totalorder %s37, 0
      %s40 = sadd.s32 %s39, 1
      %s41 = scalar_select %p38, %s39, %s40
      %p44 = pneg %p38
      %p45 = scmp.eq.s32.totalorder %s15, 1
      %p46 = por %p44, %p45
      %p47 = scmp.ne.s32.totalorder %s39, %s42
      %p48 = scmp.eq.s32.totalorder %s15, 0
      %p49 = por %p47, %p48
      %p50 = scmp.ne.s32.totalorder %s39, %s42
      %p51 = scmp.eq.s32.totalorder %s20, 1
      %p52 = por %p50, %p51
      %p53 = scmp.ne.s32.totalorder %s42, %s43
      %p54 = scmp.eq.s32.totalorder %s20, 0
      %p55 = por %p53, %p54
      %p56 = scmp.ne.s32.totalorder %s42, %s43
      %p57 = scmp.eq.s32.totalorder %s21, 1
      %p58 = por %p56, %p57
      %p60 = scmp.ne.s32.totalorder %s43, %s59
      %p61 = scmp.eq.s32.totalorder %s21, 0
      %p62 = por %p60, %p61
      %s63 = ssub.s32 %s22, %s34
      %p64 = scmp.eq.s32.totalorder %s63, 0
      %s66 = sadd.s32 %s65, 1
      %s67 = scalar_select %p64, %s65, %s66
      %p70 = pneg %p64
      %p71 = scmp.eq.s32.totalorder %s15, 1
      %p72 = por %p70, %p71
      %p73 = scmp.ne.s32.totalorder %s65, %s68
      %p74 = scmp.eq.s32.totalorder %s15, 0
      %p75 = por %p73, %p74
      %p76 = scmp.ne.s32.totalorder %s65, %s68
      %p77 = scmp.eq.s32.totalorder %s20, 1
      %p78 = por %p76, %p77
      %p79 = scmp.ne.s32.totalorder %s68, %s69
      %p80 = scmp.eq.s32.totalorder %s20, 0
      %p81 = por %p79, %p80
      %p82 = scmp.ne.s32.totalorder %s68, %s69
      %p83 = scmp.eq.s32.totalorder %s21, 1
      %p84 = por %p82, %p83
      %p86 = scmp.ne.s32.totalorder %s69, %s85
      %p87 = scmp.eq.s32.totalorder %s21, 0
      %p88 = por %p86, %p87
      %s90 = sadd.s32 %s89, 1
      %p93 = scmp.eq.s32.totalorder %s15, 1
      %p94 = scmp.ne.s32.totalorder %s89, %s91
      %p95 = scmp.eq.s32.totalorder %s15, 0
      %p96 = por %p94, %p95
      %p97 = scmp.ne.s32.totalorder %s89, %s91
      %p98 = scmp.eq.s32.totalorder %s20, 1
      %p99 = por %p97, %p98
      %p100 = scmp.ne.s32.totalorder %s91, %s92
      %p101 = scmp.eq.s32.totalorder %s20, 0
      %p102 = por %p100, %p101
      %p103 = scmp.ne.s32.totalorder %s91, %s92
      %p104 = scmp.eq.s32.totalorder %s21, 1
      %p105 = por %p103, %p104
      %p107 = scmp.ne.s32.totalorder %s92, %s106
      %p108 = scmp.eq.s32.totalorder %s21, 0
      %p109 = por %p107, %p108
      %s111 = sadd.s32 %s110, 1
      %p114 = scmp.eq.s32.totalorder %s15, 1
      %p115 = scmp.ne.s32.totalorder %s110, %s112
      %p116 = scmp.eq.s32.totalorder %s15, 0
      %p117 = por %p115, %p116
      %p118 = scmp.ne.s32.totalorder %s110, %s112
      %p119 = scmp.eq.s32.totalorder %s20, 1
      %p120 = por %p118, %p119
      %p121 = scmp.ne.s32.totalorder %s112, %s113
      %p122 = scmp.eq.s32.totalorder %s20, 0
      %p123 = por %p121, %p122
      %p124 = scmp.ne.s32.totalorder %s112, %s113
      %p125 = scmp.eq.s32.totalorder %s21, 1
      %p126 = por %p124, %p125
      %p128 = scmp.ne.s32.totalorder %s113, %s127
      %p129 = scmp.eq.s32.totalorder %s21, 0
      %p130 = por %p128, %p129
      %s132 = sadd.s32 %s131, 1
      %p135 = scmp.eq.s32.totalorder %s15, 1
      %p136 = scmp.ne.s32.totalorder %s131, %s133
      %p137 = scmp.eq.s32.totalorder %s15, 0
      %p138 = por %p136, %p137
      %p139 = scmp.ne.s32.totalorder %s131, %s133
      %p140 = scmp.eq.s32.totalorder %s20, 1
      %p141 = por %p139, %p140
      %p142 = scmp.ne.s32.totalorder %s133, %s134
      %p143 = scmp.eq.s32.totalorder %s20, 0
      %p144 = por %p142, %p143
      %p145 = scmp.ne.s32.totalorder %s133, %s134
      %p146 = scmp.eq.s32.totalorder %s21, 1
      %p147 = por %p145, %p146
      %p149 = scmp.ne.s32.totalorder %s134, %s148
      %p150 = scmp.eq.s32.totalorder %s21, 0
      %p151 = por %p149, %p150
      %s153 = sadd.s32 %s152, 1
      %p156 = scmp.eq.s32.totalorder %s15, 1
      %p157 = scmp.ne.s32.totalorder %s152, %s154
      %p158 = scmp.eq.s32.totalorder %s15, 0
      %p159 = por %p157, %p158
      %p160 = scmp.ne.s32.totalorder %s152, %s154
      %p161 = scmp.eq.s32.totalorder %s20, 1
      %p162 = por %p160, %p161
      %p163 = scmp.ne.s32.totalorder %s154, %s155
      %p164 = scmp.eq.s32.totalorder %s20, 0
      %p165 = por %p163, %p164
      %p166 = scmp.ne.s32.totalorder %s154, %s155
      %p167 = scmp.eq.s32.totalorder %s21, 1
      %p168 = por %p166, %p167
      %p170 = scmp.ne.s32.totalorder %s155, %s169
      %p171 = scmp.eq.s32.totalorder %s21, 0
      %p172 = por %p170, %p171
      %s173 = ssub.s32 %s22, %s34
      %s174 = ssub.s32 %s23, %s30
      %s175 = sor.u32 %s173, %s174
      %p176 = scmp.eq.s32.totalorder %s175, 0
      %s178 = sadd.s32 %s177, 1
      %s179 = scalar_select %p176, %s177, %s178
      %p182 = pneg %p176
      %p183 = scmp.eq.s32.totalorder %s15, 1
      %p184 = por %p182, %p183
      %p185 = scmp.ne.s32.totalorder %s177, %s180
      %p186 = scmp.eq.s32.totalorder %s15, 0
      %p187 = por %p185, %p186
      %p188 = scmp.ne.s32.totalorder %s177, %s180
      %p189 = scmp.eq.s32.totalorder %s20, 1
      %p190 = por %p188, %p189
      %p191 = scmp.ne.s32.totalorder %s180, %s181
      %p192 = scmp.eq.s32.totalorder %s20, 0
      %p193 = por %p191, %p192
      %p194 = scmp.ne.s32.totalorder %s180, %s181
      %p195 = scmp.eq.s32.totalorder %s21, 1
      %p196 = por %p194, %p195
      %p198 = scmp.ne.s32.totalorder %s181, %s197
      %p199 = scmp.eq.s32.totalorder %s21, 0
      %p200 = por %p198, %p199
      %p201 = scmp.le.s32.totalorder 1, %s15
      %p202 = scmp.lt.s32.totalorder %s15, 3
      %p203 = pnand %p201, %p202
      %p204 = pneg %p203
      // Predicated region
      $region9: #{tpu_custom_call.1} parent=5 // pred_check
        _
      $region10: #{tpu_custom_call.1} parent=5 // pred_check_branch
        %206 = sbr.rel (%p203) target = $region12
      $region11: #{tpu_custom_call.1} parent=5 // pred_region
        %s207 = ssub.s32 %s15, 1
        // Predicated region
        $region13: #{tpu_custom_call.1} parent=11 // pred_check
          %p208 = pneg %p102
        $region14: #{tpu_custom_call.1} parent=11 // pred_check_branch
          %210 = sbr.rel (%p208) target = $region16
        $region15: #{tpu_custom_call.1} parent=11 // pred_region
          _
        $region16: #{tpu_custom_call.1} parent=11 // pred_fallthru
          _
        // Predicated region
        $region17: #{tpu_custom_call.1} parent=11 // pred_check
          %p211 = pneg %p123
        $region18: #{tpu_custom_call.1} parent=11 // pred_check_branch
          %213 = sbr.rel (%p211) target = $region20
        $region19: #{tpu_custom_call.1} parent=11 // pred_region
          _
        $region20: #{tpu_custom_call.1} parent=11 // pred_fallthru
          _
        // Predicated region
        $region21: #{tpu_custom_call.1} parent=11 // pred_check
          %p214 = pneg %p144
        $region22: #{tpu_custom_call.1} parent=11 // pred_check_branch
          %216 = sbr.rel (%p214) target = $region24
        $region23: #{tpu_custom_call.1} parent=11 // pred_region
          _
        $region24: #{tpu_custom_call.1} parent=11 // pred_fallthru
          _
        // Predicated region
        $region25: #{tpu_custom_call.1} parent=11 // pred_check
          %p217 = pneg %p165
        $region26: #{tpu_custom_call.1} parent=11 // pred_check_branch
          %219 = sbr.rel (%p217) target = $region28
        $region27: #{tpu_custom_call.1} parent=11 // pred_region
          _
        $region28: #{tpu_custom_call.1} parent=11 // pred_fallthru
          _
      $region12: #{tpu_custom_call.1} parent=5 // pred_fallthru
        _
      %p220 = scmp.lt.s32.totalorder %s15, 2
      // Predicated region
      $region29: #{tpu_custom_call.1} parent=5 // pred_check
        %p221 = pneg %p220
      $region30: #{tpu_custom_call.1} parent=5 // pred_check_branch
        %223 = sbr.rel (%p221) target = $region32
      $region31: #{tpu_custom_call.1} parent=5 // pred_region
        // Predicated region
        $region33: #{tpu_custom_call.1} parent=31 // pred_check
          %p224 = pneg %p49
        $region34: #{tpu_custom_call.1} parent=31 // pred_check_branch
          %226 = sbr.rel (%p224) target = $region36
        $region35: #{tpu_custom_call.1} parent=31 // pred_region
          %s227 = smul.u32 16, %s23
          %p228 = scmp.lt.s32.totalorder %s22, 1
          %s229 = scalar_select %p228, %s22, 1
          %p230 = scmp.lt.s32.totalorder %s227, 15
          %s231 = scalar_select %p230, %s227, 15
          %s232 = smul.addr %s229, 16
          %s233 = sadd.s32 %s231, %s232
          %s234 = smul.addr %s233, 4
          %s235 = scalar_lea.vmem %s0, %s234
          %s236 = smul.u32 16, %s23
        $region36: #{tpu_custom_call.1} parent=31 // pred_fallthru
          _
        // Predicated region
        $region37: #{tpu_custom_call.1} parent=31 // pred_check
          %p237 = pneg %p75
        $region38: #{tpu_custom_call.1} parent=31 // pred_check_branch
          %239 = sbr.rel (%p237) target = $region40
        $region39: #{tpu_custom_call.1} parent=31 // pred_region
          %p240 = scmp.lt.s32.totalorder %s22, 1
          %s241 = scalar_select %p240, %s22, 1
          %s242 = smul.addr %s241, 16
          %s243 = smul.addr %s242, 4
          %s244 = scalar_lea.vmem %s1, %s243
        $region40: #{tpu_custom_call.1} parent=31 // pred_fallthru
          _
      $region32: #{tpu_custom_call.1} parent=5 // pred_fallthru
        _
      %p245 = scmp.le.s32.totalorder 1, %s15
      %p246 = scmp.lt.s32.totalorder %s15, 3
      %p247 = pnand %p245, %p246
      %p248 = pneg %p247
      // Predicated region
      $region41: #{tpu_custom_call.1} parent=5 // pred_check
        _
      $region42: #{tpu_custom_call.1} parent=5 // pred_check_branch
        %250 = sbr.rel (%p247) target = $region44
      $region43: #{tpu_custom_call.1} parent=5 // pred_region
        %s251 = ssub.s32 %s15, 1
        %s252 = smul.u32 16, %s25
        %p253 = scmp.lt.s32.totalorder %s24, 1
        %s254 = scalar_select %p253, %s24, 1
        %p255 = scmp.lt.s32.totalorder %s252, 15
        %s256 = scalar_select %p255, %s252, 15
        %s257 = smul.addr %s254, 16
        %s258 = sadd.s32 %s256, %s257
        %s259 = smul.addr %s258, 4
        %s260 = scalar_lea.vmem %s0, %s259
        %p261 = pneg %p55
        %p262 = pneg %p52
        %p263 = scmp.lt.s32.totalorder %s24, 1
        %s264 = scalar_select %p263, %s24, 1
        %s265 = smul.addr %s264, 16
        %s266 = smul.addr %s265, 4
        %s267 = scalar_lea.vmem %s1, %s266
        %p268 = pneg %p81
        %p269 = pneg %p78
        %p270 = pneg %p102
        %p271 = pneg %p99
        %p272 = pneg %p123
        %p273 = pneg %p120
        %p274 = pneg %p144
        %p275 = pneg %p141
        %p276 = pneg %p165
        %p277 = pneg %p162
        %p278 = pneg %p193
        %p279 = pneg %p190
        %s280 = sand.u32 %s180, 1
        %s281 = scalar_lea.sflag [#allocation4], %s280
        %s282 = sand.u32 %s180, 1
        %s283 = smul.addr %s282, 256
        %s284 = scalar_lea.vmem [#allocation3], %s283
        %s285 = smul.u32 16, %s25
        %p286 = scmp.lt.s32.totalorder %s24, 1
        %s287 = scalar_select %p286, %s24, 1
        %p288 = scmp.lt.s32.totalorder %s285, 15
        %s289 = scalar_select %p288, %s285, 15
        %s290 = smul.addr %s287, 16
        %s291 = sadd.s32 %s289, %s290
        %s292 = smul.addr %s291, 4
        %s293 = scalar_lea.vmem %s0, %s292
        %s294 = smul.u32 16, %s25
        %p295 = scmp.lt.s32.totalorder %s24, 1
        %s296 = scalar_select %p295, %s24, 1
        %s297 = smul.addr %s296, 16
        %s298 = smul.addr %s297, 4
        %s299 = scalar_lea.vmem %s1, %s298
        %s300 = smul.u32 16, %s25
        %p302 = scmp.eq.s32.totalorder %s25, 0
        // Predicated region
        $region45: #{tpu_custom_call.1} parent=43 // pred_check
          %p303 = pneg %p302
        $region46: #{tpu_custom_call.1} parent=43 // pred_check_branch
          %305 = sbr.rel (%p303) target = $region48
        $region47: #{tpu_custom_call.1} parent=43 // pred_region
          %v306 = vld [vmem:[%s299] sm:$0xf]
          %v307 = vld [vmem:[%s299 + $0x4] sm:$0xf]
          %v308 = vld [vmem:[%s299 + $0x8] sm:$0xf]
          %v309 = vld [vmem:[%s299 + $0xc] sm:$0xf]
          %v310 = vld [vmem:[%s299 + $0x10] sm:$0xf]
          %v311 = vld [vmem:[%s299 + $0x14] sm:$0xf]
          %v312 = vld [vmem:[%s299 + $0x18] sm:$0xf]
          %v313 = vld [vmem:[%s299 + $0x1c] sm:$0xf]
          %v314 = vld [vmem:[%s299 + $0x20] sm:$0xf]
          %v315 = vld [vmem:[%s299 + $0x24] sm:$0xf]
          %v316 = vld [vmem:[%s299 + $0x28] sm:$0xf]
          %v317 = vld [vmem:[%s299 + $0x2c] sm:$0xf]
          %v318 = vld [vmem:[%s299 + $0x30] sm:$0xf]
          %v319 = vld [vmem:[%s299 + $0x34] sm:$0xf]
          %v320 = vld [vmem:[%s299 + $0x38] sm:$0xf]
          %v321 = vld [vmem:[%s299 + $0x3c] sm:$0xf]
          %v322 = vld [vmem:[%s4] sm:$0xf]
          %v323 = vld [vmem:[%s4 + $0x4] sm:$0xf]
          %v324 = vld [vmem:[%s4 + $0x8] sm:$0xf]
          %v325 = vld [vmem:[%s4 + $0xc] sm:$0xf]
          %v326 = vld [vmem:[%s5] sm:$0x1]
          %v328 = vlaneseq
          %v329 = vshrl.u32 %v328, 7
          %v330 = vsub.s32 0, %v329
          %v331 = vrot.slane %v326, %v330
          %v349 = vunpack.c.l.b16 %v306
          %v350 = vunpack.c.l.b16 %v307
          %v351 = vunpack.c.l.b16 %v308
          %v352 = vunpack.c.l.b16 %v309
          %v353 = vunpack.c.l.b16 %v310
          %v354 = vunpack.c.l.b16 %v311
          %v355 = vunpack.c.l.b16 %v312
          %v356 = vunpack.c.l.b16 %v313
          %v357 = vunpack.c.l.b16 %v314
          %v358 = vunpack.c.l.b16 %v315
          %v359 = vunpack.c.l.b16 %v316
          %v360 = vunpack.c.l.b16 %v317
          %v361 = vunpack.c.l.b16 %v318
          %v362 = vunpack.c.l.b16 %v319
          %v363 = vunpack.c.l.b16 %v320
          %v364 = vunpack.c.l.b16 %v321
          %v365 = vpack.c.b16 %v350, %v349
          %v366 = vpack.c.b16 %v352, %v351
          %v367 = vpack.c.b16 %v354, %v353
          %v368 = vpack.c.b16 %v356, %v355
          %v369 = vpack.c.b16 %v358, %v357
          %v370 = vpack.c.b16 %v360, %v359
          %v371 = vpack.c.b16 %v362, %v361
          %v372 = vpack.c.b16 %v364, %v363
          %v377 = vunpack.c.l.b16 %v322
          %v378 = vunpack.c.l.b16 %v323
          %v379 = vunpack.c.l.b16 %v324
          %v380 = vunpack.c.l.b16 %v325
          %v381 = vpack.c.b16 %v378, %v377
          %v382 = vpack.c.b16 %v380, %v379
          %vm385 = vcmask 261120
          %v387 = vsel %vm385, %v365, 0
          %v390 = vsel %vm385, %v366, 0
          %v393 = vsel %vm385, %v367, 0
          %v396 = vsel %vm385, %v368, 0
          %v399 = vsel %vm385, %v369, 0
          %v402 = vsel %vm385, %v370, 0
          %v405 = vsel %vm385, %v371, 0
          %v408 = vsel %vm385, %v372, 0
          %410 = vmatprep.subr.bf16.mxu0 0
          %411 = vmatpush1.bf16.msra.mxu0 0
          %412 = vmatprep.subr.bf16.mxu0 0
          %413 = vmatpush1.bf16.msra.mxu0 0
          %414 = vmatprep.subr.bf16.mxu0 0
          %415 = vmatpush1.bf16.msra.mxu0 0
          %416 = vmatprep.subr.bf16.mxu0 0
          %417 = vmatpush1.bf16.msra.mxu0 0
          %418 = vmatprep.subr.bf16.mxu0 0
          %419 = vmatpush1.bf16.msra.mxu0 0
          %420 = vmatprep.subr.bf16.mxu0 0
          %421 = vmatpush1.bf16.msra.mxu0 0
          %422 = vmatprep.subr.bf16.mxu0 0
          %423 = vmatpush1.bf16.msra.mxu0 %v382
          %424 = vmatprep.subr.bf16.mxu0 0
          %425 = vmatpush1.bf16.msra.mxu0 %v381
          %426 = vmatprep.subr.bf16.mxu0 0
          %427 = vmatpush2.bf16.msra.mxu0 0
          %428 = vmatprep.subr.bf16.mxu0 0
          %429 = vmatpush2.bf16.msra.mxu0 0
          %430 = vmatprep.subr.bf16.mxu0 0
          %431 = vmatpush2.bf16.msra.mxu0 0
          %432 = vmatprep.subr.bf16.mxu0 0
          %433 = vmatpush2.bf16.msra.mxu0 0
          %434 = vmatprep.subr.bf16.mxu0 0
          %435 = vmatpush2.bf16.msra.mxu0 0
          %436 = vmatprep.subr.bf16.mxu0 0
          %437 = vmatpush2.bf16.msra.mxu0 0
          %438 = vmatprep.subr.bf16.mxu0 0
          %439 = vmatpush2.bf16.msra.mxu0 0
          %440 = vmatprep.subr.bf16.mxu0 0
          %441 = vmatpush2.bf16.msra.mxu0 0
          %442 = vmatprep.mubr.bf16.mxu0 0
          %443 = vmatmul.mubr.bf16.gmra.mxu0 %v387
          %v444 = vpop.f32.mrf.mxu0
          %v445 = vadd.f32 %v331, %v444
          %v446 = vpop.f32.mrf.mxu0
          %v447 = vpop.f32.mrf.mxu0
          %v448 = vadd.f32 %v331, %v447
          %v449 = vpop.f32.mrf.mxu0
          %450 = vmatprep.mubr.bf16.mxu0 0
          %451 = vmatmul.mubr.bf16.gmra.mxu0 %v390
          %v452 = vpop.f32.mrf.mxu0
          %v453 = vadd.f32 %v331, %v452
          %v454 = vpop.f32.mrf.mxu0
          %v455 = vpop.f32.mrf.mxu0
          %v456 = vadd.f32 %v331, %v455
          %v457 = vpop.f32.mrf.mxu0
          %458 = vmatprep.mubr.bf16.mxu0 0
          %459 = vmatmul.mubr.bf16.gmra.mxu0 %v393
          %v460 = vpop.f32.mrf.mxu0
          %v461 = vadd.f32 %v331, %v460
          %v462 = vpop.f32.mrf.mxu0
          %v463 = vpop.f32.mrf.mxu0
          %v464 = vadd.f32 %v331, %v463
          %v465 = vpop.f32.mrf.mxu0
          %466 = vmatprep.mubr.bf16.mxu0 0
          %467 = vmatmul.mubr.bf16.gmra.mxu0 %v396
          %v468 = vpop.f32.mrf.mxu0
          %v469 = vadd.f32 %v331, %v468
          %v470 = vpop.f32.mrf.mxu0
          %v471 = vpop.f32.mrf.mxu0
          %v472 = vadd.f32 %v331, %v471
          %v473 = vpop.f32.mrf.mxu0
          %474 = vmatprep.mubr.bf16.mxu0 0
          %475 = vmatmul.mubr.bf16.gmra.mxu0 %v399
          %v476 = vpop.f32.mrf.mxu0
          %v477 = vadd.f32 %v331, %v476
          %v478 = vpop.f32.mrf.mxu0
          %v479 = vpop.f32.mrf.mxu0
          %v480 = vadd.f32 %v331, %v479
          %v481 = vpop.f32.mrf.mxu0
          %482 = vmatprep.mubr.bf16.mxu0 0
          %483 = vmatmul.mubr.bf16.gmra.mxu0 %v402
          %v484 = vpop.f32.mrf.mxu0
          %v485 = vadd.f32 %v331, %v484
          %v486 = vpop.f32.mrf.mxu0
          %v487 = vpop.f32.mrf.mxu0
          %v488 = vadd.f32 %v331, %v487
          %v489 = vpop.f32.mrf.mxu0
          %490 = vmatprep.mubr.bf16.mxu0 0
          %491 = vmatmul.mubr.bf16.gmra.mxu0 %v405
          %v492 = vpop.f32.mrf.mxu0
          %v493 = vadd.f32 %v331, %v492
          %v494 = vpop.f32.mrf.mxu0
          %v495 = vpop.f32.mrf.mxu0
          %v496 = vadd.f32 %v331, %v495
          %v497 = vpop.f32.mrf.mxu0
          %498 = vmatprep.mubr.bf16.mxu0 0
          %499 = vmatmul.mubr.bf16.gmra.mxu0 %v408
          %v500 = vpop.f32.mrf.mxu0
          %v501 = vadd.f32 %v331, %v500
          %v502 = vpop.f32.mrf.mxu0
          %v503 = vpop.f32.mrf.mxu0
          %v504 = vadd.f32 %v331, %v503
          %v505 = vpop.f32.mrf.mxu0
          %506 = vdwg.mxu0
          %v507 = vpack.c.bf16 %v448, %v445
          %v508 = vpack.c.bf16 %v456, %v453
          %v509 = vpack.c.bf16 %v464, %v461
          %v510 = vpack.c.bf16 %v472, %v469
          %v511 = vpack.c.bf16 %v480, %v477
          %v512 = vpack.c.bf16 %v488, %v485
          %v513 = vpack.c.bf16 %v496, %v493
          %v514 = vpack.c.bf16 %v504, %v501
          %v523 = vunpack.c.l.b16 %v507
          %v524 = vunpack.c.h.b16 %v507
          %v525 = vunpack.c.l.b16 %v508
          %v526 = vunpack.c.h.b16 %v508
          %v527 = vunpack.c.l.b16 %v509
          %v528 = vunpack.c.h.b16 %v509
          %v529 = vunpack.c.l.b16 %v510
          %v530 = vunpack.c.h.b16 %v510
          %v531 = vunpack.c.l.b16 %v511
          %v532 = vunpack.c.h.b16 %v511
          %v533 = vunpack.c.l.b16 %v512
          %v534 = vunpack.c.h.b16 %v512
          %v535 = vunpack.c.l.b16 %v513
          %v536 = vunpack.c.h.b16 %v513
          %v537 = vunpack.c.l.b16 %v514
          %v538 = vunpack.c.h.b16 %v514
          %v539 = vpack.c.b16 %v523, %v523
          %v540 = vpack.c.b16 %v524, %v524
          %v541 = vpack.c.b16 %v525, %v525
          %v542 = vpack.c.b16 %v526, %v526
          %v543 = vpack.c.b16 %v527, %v527
          %v544 = vpack.c.b16 %v528, %v528
          %v545 = vpack.c.b16 %v529, %v529
          %v546 = vpack.c.b16 %v530, %v530
          %v547 = vpack.c.b16 %v531, %v531
          %v548 = vpack.c.b16 %v532, %v532
          %v549 = vpack.c.b16 %v533, %v533
          %v550 = vpack.c.b16 %v534, %v534
          %v551 = vpack.c.b16 %v535, %v535
          %v552 = vpack.c.b16 %v536, %v536
          %v553 = vpack.c.b16 %v537, %v537
          %v554 = vpack.c.b16 %v538, %v538
          %vm571 = vcmask 257024
          %572 = vst.msk [vmem:[#allocation2] sm:$0xf] %vm571, %v539
          %573 = vst.msk [vmem:[#allocation2 + $0x4] sm:$0xf] %vm571, %v540
          %574 = vst.msk [vmem:[#allocation2 + $0x8] sm:$0xf] %vm571, %v541
          %575 = vst.msk [vmem:[#allocation2 + $0xc] sm:$0xf] %vm571, %v542
          %576 = vst.msk [vmem:[#allocation2 + $0x10] sm:$0xf] %vm571, %v543
          %577 = vst.msk [vmem:[#allocation2 + $0x14] sm:$0xf] %vm571, %v544
          %578 = vst.msk [vmem:[#allocation2 + $0x18] sm:$0xf] %vm571, %v545
          %579 = vst.msk [vmem:[#allocation2 + $0x1c] sm:$0xf] %vm571, %v546
          %580 = vst.msk [vmem:[#allocation2 + $0x20] sm:$0xf] %vm571, %v547
          %581 = vst.msk [vmem:[#allocation2 + $0x24] sm:$0xf] %vm571, %v548
          %582 = vst.msk [vmem:[#allocation2 + $0x28] sm:$0xf] %vm571, %v549
          %583 = vst.msk [vmem:[#allocation2 + $0x2c] sm:$0xf] %vm571, %v550
          %584 = vst.msk [vmem:[#allocation2 + $0x30] sm:$0xf] %vm571, %v551
          %585 = vst.msk [vmem:[#allocation2 + $0x34] sm:$0xf] %vm571, %v552
          %586 = vst.msk [vmem:[#allocation2 + $0x38] sm:$0xf] %vm571, %v553
          %587 = vst.msk [vmem:[#allocation2 + $0x3c] sm:$0xf] %vm571, %v554
        $region48: #{tpu_custom_call.1} parent=43 // pred_fallthru
          _
        %v588 = vld [vmem:[%s293] sm:$0xf]
        %v589 = vld [vmem:[%s293 + $0x4] sm:$0xf]
        %v590 = vld [vmem:[%s293 + $0x8] sm:$0xf]
        %v591 = vld [vmem:[%s293 + $0xc] sm:$0xf]
        %v592 = vld [vmem:[%s293 + $0x10] sm:$0xf]
        %v593 = vld [vmem:[%s293 + $0x14] sm:$0xf]
        %v594 = vld [vmem:[%s293 + $0x18] sm:$0xf]
        %v595 = vld [vmem:[%s293 + $0x1c] sm:$0xf]
        %v596 = vld [vmem:[%s293 + $0x20] sm:$0xf]
        %v597 = vld [vmem:[%s293 + $0x24] sm:$0xf]
        %v598 = vld [vmem:[%s293 + $0x28] sm:$0xf]
        %v599 = vld [vmem:[%s293 + $0x2c] sm:$0xf]
        %v600 = vld [vmem:[%s293 + $0x30] sm:$0xf]
        %v601 = vld [vmem:[%s293 + $0x34] sm:$0xf]
        %v602 = vld [vmem:[%s293 + $0x38] sm:$0xf]
        %v603 = vld [vmem:[%s293 + $0x3c] sm:$0xf]
        %v604 = vld [vmem:[%s2] sm:$0xf]
        %v605 = vld [vmem:[%s2 + $0x4] sm:$0xf]
        %v606 = vld [vmem:[%s2 + $0x8] sm:$0xf]
        %v607 = vld [vmem:[%s2 + $0xc] sm:$0xf]
        %v608 = vld [vmem:[%s3] sm:$0x1]
        %v610 = vlaneseq
        %v611 = vshrl.u32 %v610, 7
        %v612 = vsub.s32 0, %v611
        %v613 = vrot.slane %v608, %v612
        %v631 = vunpack.c.l.b16 %v588
        %v632 = vunpack.c.l.b16 %v589
        %v633 = vunpack.c.l.b16 %v590
        %v634 = vunpack.c.l.b16 %v591
        %v635 = vunpack.c.l.b16 %v592
        %v636 = vunpack.c.l.b16 %v593
        %v637 = vunpack.c.l.b16 %v594
        %v638 = vunpack.c.l.b16 %v595
        %v639 = vunpack.c.l.b16 %v596
        %v640 = vunpack.c.l.b16 %v597
        %v641 = vunpack.c.l.b16 %v598
        %v642 = vunpack.c.l.b16 %v599
        %v643 = vunpack.c.l.b16 %v600
        %v644 = vunpack.c.l.b16 %v601
        %v645 = vunpack.c.l.b16 %v602
        %v646 = vunpack.c.l.b16 %v603
        %v647 = vpack.c.b16 %v632, %v631
        %v648 = vpack.c.b16 %v634, %v633
        %v649 = vpack.c.b16 %v636, %v635
        %v650 = vpack.c.b16 %v638, %v637
        %v651 = vpack.c.b16 %v640, %v639
        %v652 = vpack.c.b16 %v642, %v641
        %v653 = vpack.c.b16 %v644, %v643
        %v654 = vpack.c.b16 %v646, %v645
        %v659 = vunpack.c.l.b16 %v604
        %v660 = vunpack.c.l.b16 %v605
        %v661 = vunpack.c.l.b16 %v606
        %v662 = vunpack.c.l.b16 %v607
        %v663 = vpack.c.b16 %v660, %v659
        %v664 = vpack.c.b16 %v662, %v661
        %vm667 = vcmask 261120
        %v669 = vsel %vm667, %v647, 0
        %v672 = vsel %vm667, %v648, 0
        %v675 = vsel %vm667, %v649, 0
        %v678 = vsel %vm667, %v650, 0
        %v681 = vsel %vm667, %v651, 0
        %v684 = vsel %vm667, %v652, 0
        %v687 = vsel %vm667, %v653, 0
        %v690 = vsel %vm667, %v654, 0
        %692 = vmatprep.subr.bf16.mxu0 0
        %693 = vmatpush1.bf16.msra.mxu0 0
        %694 = vmatprep.subr.bf16.mxu0 0
        %695 = vmatpush1.bf16.msra.mxu0 0
        %696 = vmatprep.subr.bf16.mxu0 0
        %697 = vmatpush1.bf16.msra.mxu0 0
        %698 = vmatprep.subr.bf16.mxu0 0
        %699 = vmatpush1.bf16.msra.mxu0 0
        %700 = vmatprep.subr.bf16.mxu0 0
        %701 = vmatpush1.bf16.msra.mxu0 0
        %702 = vmatprep.subr.bf16.mxu0 0
        %703 = vmatpush1.bf16.msra.mxu0 0
        %704 = vmatprep.subr.bf16.mxu0 0
        %705 = vmatpush1.bf16.msra.mxu0 %v664
        %706 = vmatprep.subr.bf16.mxu0 0
        %707 = vmatpush1.bf16.msra.mxu0 %v663
        %708 = vmatprep.subr.bf16.mxu0 0
        %709 = vmatpush2.bf16.msra.mxu0 0
        %710 = vmatprep.subr.bf16.mxu0 0
        %711 = vmatpush2.bf16.msra.mxu0 0
        %712 = vmatprep.subr.bf16.mxu0 0
        %713 = vmatpush2.bf16.msra.mxu0 0
        %714 = vmatprep.subr.bf16.mxu0 0
        %715 = vmatpush2.bf16.msra.mxu0 0
        %716 = vmatprep.subr.bf16.mxu0 0
        %717 = vmatpush2.bf16.msra.mxu0 0
        %718 = vmatprep.subr.bf16.mxu0 0
        %719 = vmatpush2.bf16.msra.mxu0 0
        %720 = vmatprep.subr.bf16.mxu0 0
        %721 = vmatpush2.bf16.msra.mxu0 0
        %722 = vmatprep.subr.bf16.mxu0 0
        %723 = vmatpush2.bf16.msra.mxu0 0
        %724 = vmatprep.mubr.bf16.mxu0 0
        %725 = vmatmul.mubr.bf16.gmra.mxu0 %v669
        %v726 = vpop.f32.mrf.mxu0
        %v727 = vadd.f32 %v613, %v726
        %v728 = vpop.f32.mrf.mxu0
        %v729 = vpop.f32.mrf.mxu0
        %v730 = vadd.f32 %v613, %v729
        %v731 = vpop.f32.mrf.mxu0
        %732 = vmatprep.mubr.bf16.mxu0 0
        %733 = vmatmul.mubr.bf16.gmra.mxu0 %v672
        %v734 = vpop.f32.mrf.mxu0
        %v735 = vadd.f32 %v613, %v734
        %v736 = vpop.f32.mrf.mxu0
        %v737 = vpop.f32.mrf.mxu0
        %v738 = vadd.f32 %v613, %v737
        %v739 = vpop.f32.mrf.mxu0
        %740 = vmatprep.mubr.bf16.mxu0 0
        %741 = vmatmul.mubr.bf16.gmra.mxu0 %v675
        %v742 = vpop.f32.mrf.mxu0
        %v743 = vadd.f32 %v613, %v742
        %v744 = vpop.f32.mrf.mxu0
        %v745 = vpop.f32.mrf.mxu0
        %v746 = vadd.f32 %v613, %v745
        %v747 = vpop.f32.mrf.mxu0
        %748 = vmatprep.mubr.bf16.mxu0 0
        %749 = vmatmul.mubr.bf16.gmra.mxu0 %v678
        %v750 = vpop.f32.mrf.mxu0
        %v751 = vadd.f32 %v613, %v750
        %v752 = vpop.f32.mrf.mxu0
        %v753 = vpop.f32.mrf.mxu0
        %v754 = vadd.f32 %v613, %v753
        %v755 = vpop.f32.mrf.mxu0
        %756 = vmatprep.mubr.bf16.mxu0 0
        %757 = vmatmul.mubr.bf16.gmra.mxu0 %v681
        %v758 = vpop.f32.mrf.mxu0
        %v759 = vadd.f32 %v613, %v758
        %v760 = vpop.f32.mrf.mxu0
        %v761 = vpop.f32.mrf.mxu0
        %v762 = vadd.f32 %v613, %v761
        %v763 = vpop.f32.mrf.mxu0
        %764 = vmatprep.mubr.bf16.mxu0 0
        %765 = vmatmul.mubr.bf16.gmra.mxu0 %v684
        %v766 = vpop.f32.mrf.mxu0
        %v767 = vadd.f32 %v613, %v766
        %v768 = vpop.f32.mrf.mxu0
        %v769 = vpop.f32.mrf.mxu0
        %v770 = vadd.f32 %v613, %v769
        %v771 = vpop.f32.mrf.mxu0
        %772 = vmatprep.mubr.bf16.mxu0 0
        %773 = vmatmul.mubr.bf16.gmra.mxu0 %v687
        %v774 = vpop.f32.mrf.mxu0
        %v775 = vadd.f32 %v613, %v774
        %v776 = vpop.f32.mrf.mxu0
        %v777 = vpop.f32.mrf.mxu0
        %v778 = vadd.f32 %v613, %v777
        %v779 = vpop.f32.mrf.mxu0
        %780 = vmatprep.mubr.bf16.mxu0 0
        %781 = vmatmul.mubr.bf16.gmra.mxu0 %v690
        %v782 = vpop.f32.mrf.mxu0
        %v783 = vadd.f32 %v613, %v782
        %v784 = vpop.f32.mrf.mxu0
        %v785 = vpop.f32.mrf.mxu0
        %v786 = vadd.f32 %v613, %v785
        %v787 = vpop.f32.mrf.mxu0
        %788 = vdwg.mxu0
        %v789 = vpack.c.bf16 %v730, %v727
        %v790 = vpack.c.bf16 %v738, %v735
        %v791 = vpack.c.bf16 %v746, %v743
        %v792 = vpack.c.bf16 %v754, %v751
        %v793 = vpack.c.bf16 %v762, %v759
        %v794 = vpack.c.bf16 %v770, %v767
        %v795 = vpack.c.bf16 %v778, %v775
        %v796 = vpack.c.bf16 %v786, %v783
        %v797 = vld [vmem:[#allocation2] sm:$0xf]
        %v798 = vld [vmem:[#allocation2 + $0x4] sm:$0xf]
        %v799 = vld [vmem:[#allocation2 + $0x8] sm:$0xf]
        %v800 = vld [vmem:[#allocation2 + $0xc] sm:$0xf]
        %v801 = vld [vmem:[#allocation2 + $0x10] sm:$0xf]
        %v802 = vld [vmem:[#allocation2 + $0x14] sm:$0xf]
        %v803 = vld [vmem:[#allocation2 + $0x18] sm:$0xf]
        %v804 = vld [vmem:[#allocation2 + $0x1c] sm:$0xf]
        %v805 = vld [vmem:[#allocation2 + $0x20] sm:$0xf]
        %v806 = vld [vmem:[#allocation2 + $0x24] sm:$0xf]
        %v807 = vld [vmem:[#allocation2 + $0x28] sm:$0xf]
        %v808 = vld [vmem:[#allocation2 + $0x2c] sm:$0xf]
        %v809 = vld [vmem:[#allocation2 + $0x30] sm:$0xf]
        %v810 = vld [vmem:[#allocation2 + $0x34] sm:$0xf]
        %v811 = vld [vmem:[#allocation2 + $0x38] sm:$0xf]
        %v812 = vld [vmem:[#allocation2 + $0x3c] sm:$0xf]
        %v829 = vunpack.c.l.b16 %v797
        %v830 = vunpack.c.l.b16 %v798
        %v831 = vunpack.c.l.b16 %v799
        %v832 = vunpack.c.l.b16 %v800
        %v833 = vunpack.c.l.b16 %v801
        %v834 = vunpack.c.l.b16 %v802
        %v835 = vunpack.c.l.b16 %v803
        %v836 = vunpack.c.l.b16 %v804
        %v837 = vunpack.c.l.b16 %v805
        %v838 = vunpack.c.l.b16 %v806
        %v839 = vunpack.c.l.b16 %v807
        %v840 = vunpack.c.l.b16 %v808
        %v841 = vunpack.c.l.b16 %v809
        %v842 = vunpack.c.l.b16 %v810
        %v843 = vunpack.c.l.b16 %v811
        %v844 = vunpack.c.l.b16 %v812
        %v845 = vpack.c.b16 %v830, %v829
        %v846 = vpack.c.b16 %v832, %v831
        %v847 = vpack.c.b16 %v834, %v833
        %v848 = vpack.c.b16 %v836, %v835
        %v849 = vpack.c.b16 %v838, %v837
        %v850 = vpack.c.b16 %v840, %v839
        %v851 = vpack.c.b16 %v842, %v841
        %v852 = vpack.c.b16 %v844, %v843
        %vm853 = vcmask 130048
        %v855 = vsel %vm853, %v789, 0
        %v858 = vsel %vm853, %v790, 0
        %v861 = vsel %vm853, %v791, 0
        %v864 = vsel %vm853, %v792, 0
        %v867 = vsel %vm853, %v793, 0
        %v870 = vsel %vm853, %v794, 0
        %v873 = vsel %vm853, %v795, 0
        %v876 = vsel %vm853, %v796, 0
        %v879 = vsel %vm853, %v845, 0
        %v882 = vsel %vm853, %v846, 0
        %v885 = vsel %vm853, %v847, 0
        %v888 = vsel %vm853, %v848, 0
        %v891 = vsel %vm853, %v849, 0
        %v894 = vsel %vm853, %v850, 0
        %v897 = vsel %vm853, %v851, 0
        %v900 = vsel %vm853, %v852, 0
        %902 = vmatprep.subr.bf16.mxu0 0
        %903 = vmatpush1.bf16.xpose.msra.mxu0 %v900
        %904 = vmatprep.subr.bf16.mxu0 0
        %905 = vmatpush1.bf16.xpose.msra.mxu0 %v897
        %906 = vmatprep.subr.bf16.mxu0 0
        %907 = vmatpush1.bf16.xpose.msra.mxu0 %v894
        %908 = vmatprep.subr.bf16.mxu0 0
        %909 = vmatpush1.bf16.xpose.msra.mxu0 %v891
        %910 = vmatprep.subr.bf16.mxu0 0
        %911 = vmatpush1.bf16.xpose.msra.mxu0 %v888
        %912 = vmatprep.subr.bf16.mxu0 0
        %913 = vmatpush1.bf16.xpose.msra.mxu0 %v885
        %914 = vmatprep.subr.bf16.mxu0 0
        %915 = vmatpush1.bf16.xpose.msra.mxu0 %v882
        %916 = vmatprep.subr.bf16.mxu0 0
        %917 = vmatpush1.bf16.xpose.msra.mxu0 %v879
        %918 = vmatprep.subr.bf16.mxu0 0
        %919 = vmatpush2.bf16.xpose.msra.mxu0 0
        %920 = vmatprep.subr.bf16.mxu0 0
        %921 = vmatpush2.bf16.xpose.msra.mxu0 0
        %922 = vmatprep.subr.bf16.mxu0 0
        %923 = vmatpush2.bf16.xpose.msra.mxu0 0
        %924 = vmatprep.subr.bf16.mxu0 0
        %925 = vmatpush2.bf16.xpose.msra.mxu0 0
        %926 = vmatprep.subr.bf16.mxu0 0
        %927 = vmatpush2.bf16.xpose.msra.mxu0 0
        %928 = vmatprep.subr.bf16.mxu0 0
        %929 = vmatpush2.bf16.xpose.msra.mxu0 0
        %930 = vmatprep.subr.bf16.mxu0 0
        %931 = vmatpush2.bf16.xpose.msra.mxu0 0
        %932 = vmatprep.subr.bf16.mxu0 0
        %933 = vmatpush2.bf16.xpose.msra.mxu0 0
        %934 = vmatprep.mubr.bf16.mxu0 0
        %935 = vmatmul.mubr.bf16.gmra.mxu0 %v855
        %v936 = vpop.f32.mrf.mxu0
        %v937 = vadd.f32 0.0, %v936
        %v938 = vpop.f32.mrf.mxu0
        %v939 = vpop.f32.mrf.mxu0
        %v940 = vadd.f32 0.0, %v939
        %v941 = vpop.f32.mrf.mxu0
        %942 = vmatprep.mubr.bf16.mxu0 0
        %943 = vmatmul.mubr.bf16.gmra.mxu0 %v858
        %v944 = vpop.f32.mrf.mxu0
        %v945 = vadd.f32 0.0, %v944
        %v946 = vpop.f32.mrf.mxu0
        %v947 = vpop.f32.mrf.mxu0
        %v948 = vadd.f32 0.0, %v947
        %v949 = vpop.f32.mrf.mxu0
        %950 = vmatprep.mubr.bf16.mxu0 0
        %951 = vmatmul.mubr.bf16.gmra.mxu0 %v861
        %v952 = vpop.f32.mrf.mxu0
        %v953 = vadd.f32 0.0, %v952
        %v954 = vpop.f32.mrf.mxu0
        %v955 = vpop.f32.mrf.mxu0
        %v956 = vadd.f32 0.0, %v955
        %v957 = vpop.f32.mrf.mxu0
        %958 = vmatprep.mubr.bf16.mxu0 0
        %959 = vmatmul.mubr.bf16.gmra.mxu0 %v864
        %v960 = vpop.f32.mrf.mxu0
        %v961 = vadd.f32 0.0, %v960
        %v962 = vpop.f32.mrf.mxu0
        %v963 = vpop.f32.mrf.mxu0
        %v964 = vadd.f32 0.0, %v963
        %v965 = vpop.f32.mrf.mxu0
        %966 = vmatprep.mubr.bf16.mxu0 0
        %967 = vmatmul.mubr.bf16.gmra.mxu0 %v867
        %v968 = vpop.f32.mrf.mxu0
        %v969 = vadd.f32 0.0, %v968
        %v970 = vpop.f32.mrf.mxu0
        %v971 = vpop.f32.mrf.mxu0
        %v972 = vadd.f32 0.0, %v971
        %v973 = vpop.f32.mrf.mxu0
        %974 = vmatprep.mubr.bf16.mxu0 0
        %975 = vmatmul.mubr.bf16.gmra.mxu0 %v870
        %v976 = vpop.f32.mrf.mxu0
        %v977 = vadd.f32 0.0, %v976
        %v978 = vpop.f32.mrf.mxu0
        %v979 = vpop.f32.mrf.mxu0
        %v980 = vadd.f32 0.0, %v979
        %v981 = vpop.f32.mrf.mxu0
        %982 = vmatprep.mubr.bf16.mxu0 0
        %983 = vmatmul.mubr.bf16.gmra.mxu0 %v873
        %v984 = vpop.f32.mrf.mxu0
        %v985 = vadd.f32 0.0, %v984
        %v986 = vpop.f32.mrf.mxu0
        %v987 = vpop.f32.mrf.mxu0
        %v988 = vadd.f32 0.0, %v987
        %v989 = vpop.f32.mrf.mxu0
        %990 = vmatprep.mubr.bf16.mxu0 0
        %991 = vmatmul.mubr.bf16.gmra.mxu0 %v876
        %v992 = vpop.f32.mrf.mxu0
        %v993 = vadd.f32 0.0, %v992
        %v994 = vpop.f32.mrf.mxu0
        %v995 = vpop.f32.mrf.mxu0
        %v996 = vadd.f32 0.0, %v995
        %v997 = vpop.f32.mrf.mxu0
        %998 = vdwg.mxu0
        %999 = vmax.xlane.f32.xlu0 %v937
        %v1000 = vpop.xlane.xlu0 %999
        %1001 = vmax.xlane.f32.xlu0 %v940
        %v1002 = vpop.xlane.xlu0 %1001
        %1003 = vmax.xlane.f32.xlu0 %v945
        %v1004 = vpop.xlane.xlu0 %1003
        %1005 = vmax.xlane.f32.xlu0 %v948
        %v1006 = vpop.xlane.xlu0 %1005
        %1007 = vmax.xlane.f32.xlu0 %v953
        %v1008 = vpop.xlane.xlu0 %1007
        %1009 = vmax.xlane.f32.xlu0 %v956
        %v1010 = vpop.xlane.xlu0 %1009
        %1011 = vmax.xlane.f32.xlu0 %v961
        %v1012 = vpop.xlane.xlu0 %1011
        %1013 = vmax.xlane.f32.xlu0 %v964
        %v1014 = vpop.xlane.xlu0 %1013
        %1015 = vmax.xlane.f32.xlu0 %v969
        %v1016 = vpop.xlane.xlu0 %1015
        %1017 = vmax.xlane.f32.xlu0 %v972
        %v1018 = vpop.xlane.xlu0 %1017
        %1019 = vmax.xlane.f32.xlu0 %v977
        %v1020 = vpop.xlane.xlu0 %1019
        %1021 = vmax.xlane.f32.xlu0 %v980
        %v1022 = vpop.xlane.xlu0 %1021
        %1023 = vmax.xlane.f32.xlu0 %v985
        %v1024 = vpop.xlane.xlu0 %1023
        %1025 = vmax.xlane.f32.xlu0 %v988
        %v1026 = vpop.xlane.xlu0 %1025
        %1027 = vmax.xlane.f32.xlu0 %v993
        %v1028 = vpop.xlane.xlu0 %1027
        %1029 = vmax.xlane.f32.xlu0 %v996
        %v1030 = vpop.xlane.xlu0 %1029
        %v1031 = vsub.f32 %v937, %v1000
        %v1032 = vsub.f32 %v940, %v1002
        %v1033 = vsub.f32 %v945, %v1004
        %v1034 = vsub.f32 %v948, %v1006
        %v1035 = vsub.f32 %v953, %v1008
        %v1036 = vsub.f32 %v956, %v1010
        %v1037 = vsub.f32 %v961, %v1012
        %v1038 = vsub.f32 %v964, %v1014
        %v1039 = vsub.f32 %v969, %v1016
        %v1040 = vsub.f32 %v972, %v1018
        %v1041 = vsub.f32 %v977, %v1020
        %v1042 = vsub.f32 %v980, %v1022
        %v1043 = vsub.f32 %v985, %v1024
        %v1044 = vsub.f32 %v988, %v1026
        %v1045 = vsub.f32 %v993, %v1028
        %v1046 = vsub.f32 %v996, %v1030
        %v1047 = vmul.f32 %v1031, 1.442695
        %v1048 = vpow.pop %v1047
        %v1049 = vmul.f32 %v1032, 1.442695
        %v1050 = vpow.pop %v1049
        %v1051 = vmul.f32 %v1033, 1.442695
        %v1052 = vpow.pop %v1051
        %v1053 = vmul.f32 %v1034, 1.442695
        %v1054 = vpow.pop %v1053
        %v1055 = vmul.f32 %v1035, 1.442695
        %v1056 = vpow.pop %v1055
        %v1057 = vmul.f32 %v1036, 1.442695
        %v1058 = vpow.pop %v1057
        %v1059 = vmul.f32 %v1037, 1.442695
        %v1060 = vpow.pop %v1059
        %v1061 = vmul.f32 %v1038, 1.442695
        %v1062 = vpow.pop %v1061
        %v1063 = vmul.f32 %v1039, 1.442695
        %v1064 = vpow.pop %v1063
        %v1065 = vmul.f32 %v1040, 1.442695
        %v1066 = vpow.pop %v1065
        %v1067 = vmul.f32 %v1041, 1.442695
        %v1068 = vpow.pop %v1067
        %v1069 = vmul.f32 %v1042, 1.442695
        %v1070 = vpow.pop %v1069
        %v1071 = vmul.f32 %v1043, 1.442695
        %v1072 = vpow.pop %v1071
        %v1073 = vmul.f32 %v1044, 1.442695
        %v1074 = vpow.pop %v1073
        %v1075 = vmul.f32 %v1045, 1.442695
        %v1076 = vpow.pop %v1075
        %v1077 = vmul.f32 %v1046, 1.442695
        %v1078 = vpow.pop %v1077
        %1079 = vadd.xlane.f32.xlu0 %v1048
        %v1080 = vpop.xlane.xlu0 %1079
        %1081 = vadd.xlane.f32.xlu0 %v1050
        %v1082 = vpop.xlane.xlu0 %1081
        %1083 = vadd.xlane.f32.xlu0 %v1052
        %v1084 = vpop.xlane.xlu0 %1083
        %1085 = vadd.xlane.f32.xlu0 %v1054
        %v1086 = vpop.xlane.xlu0 %1085
        %1087 = vadd.xlane.f32.xlu0 %v1056
        %v1088 = vpop.xlane.xlu0 %1087
        %1089 = vadd.xlane.f32.xlu0 %v1058
        %v1090 = vpop.xlane.xlu0 %1089
        %1091 = vadd.xlane.f32.xlu0 %v1060
        %v1092 = vpop.xlane.xlu0 %1091
        %1093 = vadd.xlane.f32.xlu0 %v1062
        %v1094 = vpop.xlane.xlu0 %1093
        %1095 = vadd.xlane.f32.xlu0 %v1064
        %v1096 = vpop.xlane.xlu0 %1095
        %1097 = vadd.xlane.f32.xlu0 %v1066
        %v1098 = vpop.xlane.xlu0 %1097
        %1099 = vadd.xlane.f32.xlu0 %v1068
        %v1100 = vpop.xlane.xlu0 %1099
        %1101 = vadd.xlane.f32.xlu0 %v1070
        %v1102 = vpop.xlane.xlu0 %1101
        %1103 = vadd.xlane.f32.xlu0 %v1072
        %v1104 = vpop.xlane.xlu0 %1103
        %1105 = vadd.xlane.f32.xlu0 %v1074
        %v1106 = vpop.xlane.xlu0 %1105
        %1107 = vadd.xlane.f32.xlu0 %v1076
        %v1108 = vpop.xlane.xlu0 %1107
        %1109 = vadd.xlane.f32.xlu0 %v1078
        %v1110 = vpop.xlane.xlu0 %1109
        %v1111 = vrcp.pop %v1080
        %v1112 = vrcp.pop %v1082
        %v1113 = vrcp.pop %v1084
        %v1114 = vrcp.pop %v1086
        %v1115 = vrcp.pop %v1088
        %v1116 = vrcp.pop %v1090
        %v1117 = vrcp.pop %v1092
        %v1118 = vrcp.pop %v1094
        %v1119 = vrcp.pop %v1096
        %v1120 = vrcp.pop %v1098
        %v1121 = vrcp.pop %v1100
        %v1122 = vrcp.pop %v1102
        %v1123 = vrcp.pop %v1104
        %v1124 = vrcp.pop %v1106
        %v1125 = vrcp.pop %v1108
        %v1126 = vrcp.pop %v1110
        %v1127 = vmul.f32 %v1048, %v1111
        %v1128 = vmul.f32 %v1050, %v1112
        %v1129 = vmul.f32 %v1052, %v1113
        %v1130 = vmul.f32 %v1054, %v1114
        %v1131 = vmul.f32 %v1056, %v1115
        %v1132 = vmul.f32 %v1058, %v1116
        %v1133 = vmul.f32 %v1060, %v1117
        %v1134 = vmul.f32 %v1062, %v1118
        %v1135 = vmul.f32 %v1064, %v1119
        %v1136 = vmul.f32 %v1066, %v1120
        %v1137 = vmul.f32 %v1068, %v1121
        %v1138 = vmul.f32 %v1070, %v1122
        %v1139 = vmul.f32 %v1072, %v1123
        %v1140 = vmul.f32 %v1074, %v1124
        %v1141 = vmul.f32 %v1076, %v1125
        %v1142 = vmul.f32 %v1078, %v1126
        %1143 = vst [vmem:[%s284] sm:$0xff] %v1127
        %1144 = vst [vmem:[%s284 + $0x8] sm:$0xff] %v1128
        %1145 = vst [vmem:[%s284 + $0x10] sm:$0xff] %v1129
        %1146 = vst [vmem:[%s284 + $0x18] sm:$0xff] %v1130
        %1147 = vst [vmem:[%s284 + $0x20] sm:$0xff] %v1131
        %1148 = vst [vmem:[%s284 + $0x28] sm:$0xff] %v1132
        %1149 = vst [vmem:[%s284 + $0x30] sm:$0xff] %v1133
        %1150 = vst [vmem:[%s284 + $0x38] sm:$0xff] %v1134
        %1151 = vst [vmem:[%s284 + $0x40] sm:$0xff] %v1135
        %1152 = vst [vmem:[%s284 + $0x48] sm:$0xff] %v1136
        %1153 = vst [vmem:[%s284 + $0x50] sm:$0xff] %v1137
        %1154 = vst [vmem:[%s284 + $0x58] sm:$0xff] %v1138
        %1155 = vst [vmem:[%s284 + $0x60] sm:$0xff] %v1139
        %1156 = vst [vmem:[%s284 + $0x68] sm:$0xff] %v1140
        %1157 = vst [vmem:[%s284 + $0x70] sm:$0xff] %v1141
        %1158 = vst [vmem:[%s284 + $0x78] sm:$0xff] %v1142
        %1167 = vrot.lane.b32.xlu0 %v789, 112
        %v1168 = vpop.permute.xlu0 %1167
        %1169 = vrot.lane.b32.xlu0 %v790, 112
        %v1170 = vpop.permute.xlu0 %1169
        %1171 = vrot.lane.b32.xlu0 %v791, 112
        %v1172 = vpop.permute.xlu0 %1171
        %1173 = vrot.lane.b32.xlu0 %v792, 112
        %v1174 = vpop.permute.xlu0 %1173
        %1175 = vrot.lane.b32.xlu0 %v793, 112
        %v1176 = vpop.permute.xlu0 %1175
        %1177 = vrot.lane.b32.xlu0 %v794, 112
        %v1178 = vpop.permute.xlu0 %1177
        %1179 = vrot.lane.b32.xlu0 %v795, 112
        %v1180 = vpop.permute.xlu0 %1179
        %1181 = vrot.lane.b32.xlu0 %v796, 112
        %v1182 = vpop.permute.xlu0 %1181
        %1183 = vrot.lane.b32.xlu0 %v845, 112
        %v1184 = vpop.permute.xlu0 %1183
        %1185 = vrot.lane.b32.xlu0 %v846, 112
        %v1186 = vpop.permute.xlu0 %1185
        %1187 = vrot.lane.b32.xlu0 %v847, 112
        %v1188 = vpop.permute.xlu0 %1187
        %1189 = vrot.lane.b32.xlu0 %v848, 112
        %v1190 = vpop.permute.xlu0 %1189
        %1191 = vrot.lane.b32.xlu0 %v849, 112
        %v1192 = vpop.permute.xlu0 %1191
        %1193 = vrot.lane.b32.xlu0 %v850, 112
        %v1194 = vpop.permute.xlu0 %1193
        %1195 = vrot.lane.b32.xlu0 %v851, 112
        %v1196 = vpop.permute.xlu0 %1195
        %1197 = vrot.lane.b32.xlu0 %v852, 112
        %v1198 = vpop.permute.xlu0 %1197
        %v1200 = vsel %vm853, %v1168, 0
        %v1203 = vsel %vm853, %v1170, 0
        %v1206 = vsel %vm853, %v1172, 0
        %v1209 = vsel %vm853, %v1174, 0
        %v1212 = vsel %vm853, %v1176, 0
        %v1215 = vsel %vm853, %v1178, 0
        %v1218 = vsel %vm853, %v1180, 0
        %v1221 = vsel %vm853, %v1182, 0
        %v1224 = vsel %vm853, %v1184, 0
        %v1227 = vsel %vm853, %v1186, 0
        %v1230 = vsel %vm853, %v1188, 0
        %v1233 = vsel %vm853, %v1190, 0
        %v1236 = vsel %vm853, %v1192, 0
        %v1239 = vsel %vm853, %v1194, 0
        %v1242 = vsel %vm853, %v1196, 0
        %v1245 = vsel %vm853, %v1198, 0
        %1247 = vmatprep.subr.bf16.mxu0 0
        %1248 = vmatpush1.bf16.xpose.msra.mxu0 %v1245
        %1249 = vmatprep.subr.bf16.mxu0 0
        %1250 = vmatpush1.bf16.xpose.msra.mxu0 %v1242
        %1251 = vmatprep.subr.bf16.mxu0 0
        %1252 = vmatpush1.bf16.xpose.msra.mxu0 %v1239
        %1253 = vmatprep.subr.bf16.mxu0 0
        %1254 = vmatpush1.bf16.xpose.msra.mxu0 %v1236
        %1255 = vmatprep.subr.bf16.mxu0 0
        %1256 = vmatpush1.bf16.xpose.msra.mxu0 %v1233
        %1257 = vmatprep.subr.bf16.mxu0 0
        %1258 = vmatpush1.bf16.xpose.msra.mxu0 %v1230
        %1259 = vmatprep.subr.bf16.mxu0 0
        %1260 = vmatpush1.bf16.xpose.msra.mxu0 %v1227
        %1261 = vmatprep.subr.bf16.mxu0 0
        %1262 = vmatpush1.bf16.xpose.msra.mxu0 %v1224
        %1263 = vmatprep.subr.bf16.mxu0 0
        %1264 = vmatpush2.bf16.xpose.msra.mxu0 0
        %1265 = vmatprep.subr.bf16.mxu0 0
        %1266 = vmatpush2.bf16.xpose.msra.mxu0 0
        %1267 = vmatprep.subr.bf16.mxu0 0
        %1268 = vmatpush2.bf16.xpose.msra.mxu0 0
        %1269 = vmatprep.subr.bf16.mxu0 0
        %1270 = vmatpush2.bf16.xpose.msra.mxu0 0
        %1271 = vmatprep.subr.bf16.mxu0 0
        %1272 = vmatpush2.bf16.xpose.msra.mxu0 0
        %1273 = vmatprep.subr.bf16.mxu0 0
        %1274 = vmatpush2.bf16.xpose.msra.mxu0 0
        %1275 = vmatprep.subr.bf16.mxu0 0
        %1276 = vmatpush2.bf16.xpose.msra.mxu0 0
        %1277 = vmatprep.subr.bf16.mxu0 0
        %1278 = vmatpush2.bf16.xpose.msra.mxu0 0
        %1279 = vmatprep.mubr.bf16.mxu0 0
        %1280 = vmatmul.mubr.bf16.gmra.mxu0 %v1200
        %v1281 = vpop.f32.mrf.mxu0
        %v1282 = vadd.f32 0.0, %v1281
        %v1283 = vpop.f32.mrf.mxu0
        %v1284 = vpop.f32.mrf.mxu0
        %v1285 = vadd.f32 0.0, %v1284
        %v1286 = vpop.f32.mrf.mxu0
        %1287 = vmatprep.mubr.bf16.mxu0 0
        %1288 = vmatmul.mubr.bf16.gmra.mxu0 %v1203
        %v1289 = vpop.f32.mrf.mxu0
        %v1290 = vadd.f32 0.0, %v1289
        %v1291 = vpop.f32.mrf.mxu0
        %v1292 = vpop.f32.mrf.mxu0
        %v1293 = vadd.f32 0.0, %v1292
        %v1294 = vpop.f32.mrf.mxu0
        %1295 = vmatprep.mubr.bf16.mxu0 0
        %1296 = vmatmul.mubr.bf16.gmra.mxu0 %v1206
        %v1297 = vpop.f32.mrf.mxu0
        %v1298 = vadd.f32 0.0, %v1297
        %v1299 = vpop.f32.mrf.mxu0
        %v1300 = vpop.f32.mrf.mxu0
        %v1301 = vadd.f32 0.0, %v1300
        %v1302 = vpop.f32.mrf.mxu0
        %1303 = vmatprep.mubr.bf16.mxu0 0
        %1304 = vmatmul.mubr.bf16.gmra.mxu0 %v1209
        %v1305 = vpop.f32.mrf.mxu0
        %v1306 = vadd.f32 0.0, %v1305
        %v1307 = vpop.f32.mrf.mxu0
        %v1308 = vpop.f32.mrf.mxu0
        %v1309 = vadd.f32 0.0, %v1308
        %v1310 = vpop.f32.mrf.mxu0
        %1311 = vmatprep.mubr.bf16.mxu0 0
        %1312 = vmatmul.mubr.bf16.gmra.mxu0 %v1212
        %v1313 = vpop.f32.mrf.mxu0
        %v1314 = vadd.f32 0.0, %v1313
        %v1315 = vpop.f32.mrf.mxu0
        %v1316 = vpop.f32.mrf.mxu0
        %v1317 = vadd.f32 0.0, %v1316
        %v1318 = vpop.f32.mrf.mxu0
        %1319 = vmatprep.mubr.bf16.mxu0 0
        %1320 = vmatmul.mubr.bf16.gmra.mxu0 %v1215
        %v1321 = vpop.f32.mrf.mxu0
        %v1322 = vadd.f32 0.0, %v1321
        %v1323 = vpop.f32.mrf.mxu0
        %v1324 = vpop.f32.mrf.mxu0
        %v1325 = vadd.f32 0.0, %v1324
        %v1326 = vpop.f32.mrf.mxu0
        %1327 = vmatprep.mubr.bf16.mxu0 0
        %1328 = vmatmul.mubr.bf16.gmra.mxu0 %v1218
        %v1329 = vpop.f32.mrf.mxu0
        %v1330 = vadd.f32 0.0, %v1329
        %v1331 = vpop.f32.mrf.mxu0
        %v1332 = vpop.f32.mrf.mxu0
        %v1333 = vadd.f32 0.0, %v1332
        %v1334 = vpop.f32.mrf.mxu0
        %1335 = vmatprep.mubr.bf16.mxu0 0
        %1336 = vmatmul.mubr.bf16.gmra.mxu0 %v1221
        %v1337 = vpop.f32.mrf.mxu0
        %v1338 = vadd.f32 0.0, %v1337
        %v1339 = vpop.f32.mrf.mxu0
        %v1340 = vpop.f32.mrf.mxu0
        %v1341 = vadd.f32 0.0, %v1340
        %v1342 = vpop.f32.mrf.mxu0
        %1343 = vdwg.mxu0
        %1344 = vmax.xlane.f32.xlu0 %v1282
        %v1345 = vpop.xlane.xlu0 %1344
        %1346 = vmax.xlane.f32.xlu0 %v1285
        %v1347 = vpop.xlane.xlu0 %1346
        %1348 = vmax.xlane.f32.xlu0 %v1290
        %v1349 = vpop.xlane.xlu0 %1348
        %1350 = vmax.xlane.f32.xlu0 %v1293
        %v1351 = vpop.xlane.xlu0 %1350
        %1352 = vmax.xlane.f32.xlu0 %v1298
        %v1353 = vpop.xlane.xlu0 %1352
        %1354 = vmax.xlane.f32.xlu0 %v1301
        %v1355 = vpop.xlane.xlu0 %1354
        %1356 = vmax.xlane.f32.xlu0 %v1306
        %v1357 = vpop.xlane.xlu0 %1356
        %1358 = vmax.xlane.f32.xlu0 %v1309
        %v1359 = vpop.xlane.xlu0 %1358
        %1360 = vmax.xlane.f32.xlu0 %v1314
        %v1361 = vpop.xlane.xlu0 %1360
        %1362 = vmax.xlane.f32.xlu0 %v1317
        %v1363 = vpop.xlane.xlu0 %1362
        %1364 = vmax.xlane.f32.xlu0 %v1322
        %v1365 = vpop.xlane.xlu0 %1364
        %1366 = vmax.xlane.f32.xlu0 %v1325
        %v1367 = vpop.xlane.xlu0 %1366
        %1368 = vmax.xlane.f32.xlu0 %v1330
        %v1369 = vpop.xlane.xlu0 %1368
        %1370 = vmax.xlane.f32.xlu0 %v1333
        %v1371 = vpop.xlane.xlu0 %1370
        %1372 = vmax.xlane.f32.xlu0 %v1338
        %v1373 = vpop.xlane.xlu0 %1372
        %1374 = vmax.xlane.f32.xlu0 %v1341
        %v1375 = vpop.xlane.xlu0 %1374
        %v1376 = vsub.f32 %v1282, %v1345
        %v1377 = vsub.f32 %v1285, %v1347
        %v1378 = vsub.f32 %v1290, %v1349
        %v1379 = vsub.f32 %v1293, %v1351
        %v1380 = vsub.f32 %v1298, %v1353
        %v1381 = vsub.f32 %v1301, %v1355
        %v1382 = vsub.f32 %v1306, %v1357
        %v1383 = vsub.f32 %v1309, %v1359
        %v1384 = vsub.f32 %v1314, %v1361
        %v1385 = vsub.f32 %v1317, %v1363
        %v1386 = vsub.f32 %v1322, %v1365
        %v1387 = vsub.f32 %v1325, %v1367
        %v1388 = vsub.f32 %v1330, %v1369
        %v1389 = vsub.f32 %v1333, %v1371
        %v1390 = vsub.f32 %v1338, %v1373
        %v1391 = vsub.f32 %v1341, %v1375
        %v1392 = vmul.f32 %v1376, 1.442695
        %v1393 = vpow.pop %v1392
        %v1394 = vmul.f32 %v1377, 1.442695
        %v1395 = vpow.pop %v1394
        %v1396 = vmul.f32 %v1378, 1.442695
        %v1397 = vpow.pop %v1396
        %v1398 = vmul.f32 %v1379, 1.442695
        %v1399 = vpow.pop %v1398
        %v1400 = vmul.f32 %v1380, 1.442695
        %v1401 = vpow.pop %v1400
        %v1402 = vmul.f32 %v1381, 1.442695
        %v1403 = vpow.pop %v1402
        %v1404 = vmul.f32 %v1382, 1.442695
        %v1405 = vpow.pop %v1404
        %v1406 = vmul.f32 %v1383, 1.442695
        %v1407 = vpow.pop %v1406
        %v1408 = vmul.f32 %v1384, 1.442695
        %v1409 = vpow.pop %v1408
        %v1410 = vmul.f32 %v1385, 1.442695
        %v1411 = vpow.pop %v1410
        %v1412 = vmul.f32 %v1386, 1.442695
        %v1413 = vpow.pop %v1412
        %v1414 = vmul.f32 %v1387, 1.442695
        %v1415 = vpow.pop %v1414
        %v1416 = vmul.f32 %v1388, 1.442695
        %v1417 = vpow.pop %v1416
        %v1418 = vmul.f32 %v1389, 1.442695
        %v1419 = vpow.pop %v1418
        %v1420 = vmul.f32 %v1390, 1.442695
        %v1421 = vpow.pop %v1420
        %v1422 = vmul.f32 %v1391, 1.442695
        %v1423 = vpow.pop %v1422
        %1424 = vadd.xlane.f32.xlu0 %v1393
        %v1425 = vpop.xlane.xlu0 %1424
        %1426 = vadd.xlane.f32.xlu0 %v1395
        %v1427 = vpop.xlane.xlu0 %1426
        %1428 = vadd.xlane.f32.xlu0 %v1397
        %v1429 = vpop.xlane.xlu0 %1428
        %1430 = vadd.xlane.f32.xlu0 %v1399
        %v1431 = vpop.xlane.xlu0 %1430
        %1432 = vadd.xlane.f32.xlu0 %v1401
        %v1433 = vpop.xlane.xlu0 %1432
        %1434 = vadd.xlane.f32.xlu0 %v1403
        %v1435 = vpop.xlane.xlu0 %1434
        %1436 = vadd.xlane.f32.xlu0 %v1405
        %v1437 = vpop.xlane.xlu0 %1436
        %1438 = vadd.xlane.f32.xlu0 %v1407
        %v1439 = vpop.xlane.xlu0 %1438
        %1440 = vadd.xlane.f32.xlu0 %v1409
        %v1441 = vpop.xlane.xlu0 %1440
        %1442 = vadd.xlane.f32.xlu0 %v1411
        %v1443 = vpop.xlane.xlu0 %1442
        %1444 = vadd.xlane.f32.xlu0 %v1413
        %v1445 = vpop.xlane.xlu0 %1444
        %1446 = vadd.xlane.f32.xlu0 %v1415
        %v1447 = vpop.xlane.xlu0 %1446
        %1448 = vadd.xlane.f32.xlu0 %v1417
        %v1449 = vpop.xlane.xlu0 %1448
        %1450 = vadd.xlane.f32.xlu0 %v1419
        %v1451 = vpop.xlane.xlu0 %1450
        %1452 = vadd.xlane.f32.xlu0 %v1421
        %v1453 = vpop.xlane.xlu0 %1452
        %1454 = vadd.xlane.f32.xlu0 %v1423
        %v1455 = vpop.xlane.xlu0 %1454
        %v1456 = vrcp.pop %v1425
        %v1457 = vrcp.pop %v1427
        %v1458 = vrcp.pop %v1429
        %v1459 = vrcp.pop %v1431
        %v1460 = vrcp.pop %v1433
        %v1461 = vrcp.pop %v1435
        %v1462 = vrcp.pop %v1437
        %v1463 = vrcp.pop %v1439
        %v1464 = vrcp.pop %v1441
        %v1465 = vrcp.pop %v1443
        %v1466 = vrcp.pop %v1445
        %v1467 = vrcp.pop %v1447
        %v1468 = vrcp.pop %v1449
        %v1469 = vrcp.pop %v1451
        %v1470 = vrcp.pop %v1453
        %v1471 = vrcp.pop %v1455
        %v1472 = vmul.f32 %v1393, %v1456
        %v1473 = vmul.f32 %v1395, %v1457
        %v1474 = vmul.f32 %v1397, %v1458
        %v1475 = vmul.f32 %v1399, %v1459
        %v1476 = vmul.f32 %v1401, %v1460
        %v1477 = vmul.f32 %v1403, %v1461
        %v1478 = vmul.f32 %v1405, %v1462
        %v1479 = vmul.f32 %v1407, %v1463
        %v1480 = vmul.f32 %v1409, %v1464
        %v1481 = vmul.f32 %v1411, %v1465
        %v1482 = vmul.f32 %v1413, %v1466
        %v1483 = vmul.f32 %v1415, %v1467
        %v1484 = vmul.f32 %v1417, %v1468
        %v1485 = vmul.f32 %v1419, %v1469
        %v1486 = vmul.f32 %v1421, %v1470
        %v1487 = vmul.f32 %v1423, %v1471
        %s1488 = scalar_lea.vmem %s284, 128 [#allocation3]
        %1489 = vst [vmem:[%s1488] sm:$0xff] %v1472
        %1490 = vst [vmem:[%s1488 + $0x8] sm:$0xff] %v1473
        %1491 = vst [vmem:[%s1488 + $0x10] sm:$0xff] %v1474
        %1492 = vst [vmem:[%s1488 + $0x18] sm:$0xff] %v1475
        %1493 = vst [vmem:[%s1488 + $0x20] sm:$0xff] %v1476
        %1494 = vst [vmem:[%s1488 + $0x28] sm:$0xff] %v1477
        %1495 = vst [vmem:[%s1488 + $0x30] sm:$0xff] %v1478
        %1496 = vst [vmem:[%s1488 + $0x38] sm:$0xff] %v1479
        %1497 = vst [vmem:[%s1488 + $0x40] sm:$0xff] %v1480
        %1498 = vst [vmem:[%s1488 + $0x48] sm:$0xff] %v1481
        %1499 = vst [vmem:[%s1488 + $0x50] sm:$0xff] %v1482
        %1500 = vst [vmem:[%s1488 + $0x58] sm:$0xff] %v1483
        %1501 = vst [vmem:[%s1488 + $0x60] sm:$0xff] %v1484
        %1502 = vst [vmem:[%s1488 + $0x68] sm:$0xff] %v1485
        %1503 = vst [vmem:[%s1488 + $0x70] sm:$0xff] %v1486
        %1504 = vst [vmem:[%s1488 + $0x78] sm:$0xff] %v1487
        %s1505 = sand.u32 %s180, 1
        %s1506 = scalar_lea.sflag [#allocation4], %s1505
        %s1507 = sand.u32 %s180, 1
        %s1508 = smul.addr %s1507, 256
        %s1509 = scalar_lea.vmem [#allocation3], %s1508
        // Predicated region
        $region49: #{tpu_custom_call.1} parent=43 // pred_check
          %p1510 = pneg %p190
        $region50: #{tpu_custom_call.1} parent=43 // pred_check_branch
          %1512 = sbr.rel (%p1510) target = $region52
        $region51: #{tpu_custom_call.1} parent=43 // pred_region
          %s1513 = smul.u32 16, %s25
          %s1515 = ssub.s32 4096, 4096
          %1516 = vsyncadd %s1506, %s1515
          %s1517 = smul.addr %s24, 32
          %s1518 = sadd.s32 %s1513, %s1517
          %s1519 = smul.addr %s1518, 128
          %s1520 = scalar_lea.hbm %s6, %s1519
          %s1521 = sshll.u32 %s1509, 4
          %s1522 = int_to_ptr.vmem [resolvable:$true] %s1521
          %1527 = dma.vmem_to_hbm [thread:$0]  %s1522, 4096, %s1520, %s1506, 128, 128, 8
        $region52: #{tpu_custom_call.1} parent=43 // pred_fallthru
          _
      $region44: #{tpu_custom_call.1} parent=5 // pred_fallthru
        _
      %p1528 = scmp.le.s32.totalorder 2, %s15
      // Predicated region
      $region53: #{tpu_custom_call.1} parent=5 // pred_check
        %p1529 = pneg %p1528
      $region54: #{tpu_custom_call.1} parent=5 // pred_check_branch
        %1531 = sbr.rel (%p1529) target = $region56
      $region55: #{tpu_custom_call.1} parent=5 // pred_region
        %s1532 = ssub.s32 %s15, 2
        // Predicated region
        $region57: #{tpu_custom_call.1} parent=55 // pred_check
          %p1533 = pneg %p196
        $region58: #{tpu_custom_call.1} parent=55 // pred_check_branch
          %1535 = sbr.rel (%p1533) target = $region60
        $region59: #{tpu_custom_call.1} parent=55 // pred_region
          %s1536 = sand.u32 %s181, 1
          %s1537 = scalar_lea.sflag [#allocation4], %s1536
          %s1538 = sand.u32 %s181, 1
          %s1539 = smul.addr %s1538, 256
          %s1540 = scalar_lea.vmem [#allocation3], %s1539
          %1541 = dma.done %s1537, 4096
        $region60: #{tpu_custom_call.1} parent=55 // pred_fallthru
          _
      $region56: #{tpu_custom_call.1} parent=5 // pred_fallthru
        _
    $region6: #{tpu_custom_call.1} parent=1 // loop_footer
      %s19 = sadd.s32 1, %s15
    $region7: #{tpu_custom_call.1} parent=1 // loop_footer_branch
      %14 = sbr.rel target = $region3
    $region8: #{tpu_custom_call.1} parent=1 // loop_exit
      _
    %1542 = vsyncpa [#allocation4], 1
    %s1543 = scalar_lea.sflag [#allocation4], 1
    %1544 = vsyncpa %s1543, 1

</llo_original>
